<compile_context>
chip_gen: v6e
topology: v6e:2x2x1
jax: 0.10.0
libtpu: 0.0.40
codegen_flags: <defaults>
</compile_context>

<pallas_src>
import jax
import jax.numpy as jnp
import numpy as np
from jax.experimental import pallas as pl
from jax.experimental.pallas import tpu as pltpu


# ---------------------------------------------------------------------------
# VMEM budget (generation aware: v5e/v6e 128 MiB physical, v7x 64 MiB).
# ---------------------------------------------------------------------------
def _vmem_budget_bytes():
    try:
        cap = pltpu.get_tpu_info().vmem_capacity_bytes
    except Exception:
        cap = 64 << 20  # conservative (v7x-sized) default
    return int(cap * 0.72)  # leave headroom for Mosaic internal scratch


def _pick_tile(dim, candidates):
    for c in candidates:
        if dim % c == 0:
            return c
    return dim


# ---------------------------------------------------------------------------
# Generic tiled matmul (+ bias): bf16 MXU operands, f32 accumulation.
# Grid is (N-blocks outer, M-blocks inner) so the weight block index only
# changes on the outer axis -> the weight matrix is streamed from HBM once.
# ---------------------------------------------------------------------------
def _matmul_bias_kernel(x_ref, w_ref, b_ref, o_ref):
    o_ref[...] = (
        jnp.dot(x_ref[...], w_ref[...], preferred_element_type=jnp.float32)
        + b_ref[...]
    ).astype(o_ref.dtype)


def matmul_bias(x, w, b, out_dtype=jnp.float32):
    """(M, K) @ (K, N) + (1, N); K kept whole, tiled over M and N."""
    M, K = x.shape
    _, N = w.shape
    x = x.astype(jnp.bfloat16)
    w = w.astype(jnp.bfloat16)
    b = b.astype(jnp.float32)

    budget = _vmem_budget_bytes()
    tm = _pick_tile(M, (1024, 512, 256, 128, 64, 32, 16, 8))
    tn = _pick_tile(N, (1024, 512, 256, 128))
    out_bytes = jnp.dtype(out_dtype).itemsize

    def vmem_bytes(tm_, tn_):  # double-buffered in/out + bias
        return 2 * (tm_ * K * 2 + K * tn_ * 2 + tm_ * tn_ * out_bytes + tn_ * 4)

    while vmem_bytes(tm, tn) > budget and tm % 16 == 0:
        tm //= 2
    while vmem_bytes(tm, tn) > budget and tn % 256 == 0:
        tn //= 2

    return pl.pallas_call(
        _matmul_bias_kernel,
        out_shape=jax.ShapeDtypeStruct((M, N), out_dtype),
        grid_spec=pltpu.PrefetchScalarGridSpec(
            num_scalar_prefetch=0,
            grid=(N // tn, M // tm),  # weight-outer: W block re-fetched only N//tn times
            in_specs=[
                pl.BlockSpec((tm, K), lambda j, i: (i, 0)),
                pl.BlockSpec((K, tn), lambda j, i: (0, j)),
                pl.BlockSpec((1, tn), lambda j, i: (0, j)),
            ],
            out_specs=pl.BlockSpec((tm, tn), lambda j, i: (i, j)),
        ),
        compiler_params=pltpu.CompilerParams(
            dimension_semantics=("parallel", "parallel"),
            vmem_limit_bytes=budget,
        ),
    )(x, w, b)


# ---------------------------------------------------------------------------
# Sequential LSTM recurrence kernel (only h @ W_hh + gate math per timestep).
# ---------------------------------------------------------------------------
def _sigmoid_via_tanh(x):
    # One EUP tanh instead of exp + divide: shortens the per-step MXU->EUP->VPU chain.
    return 0.5 * jnp.tanh(0.5 * x) + 0.5


def _lstm_recurrence_kernel(gx_ref, whh_ref, h_out_ref, h_scr, c_scr):
    """grid = (B/BB, T/TT); one grid step == TT timesteps of one batch block.

    gx_ref      : (TT, BB, 4H) bf16  precomputed x @ W_ih + (b_ih + b_hh)
    whh_ref     : (H, 4H)      bf16  hidden->gates weights (index-invariant)
    h_out_ref   : (TT, BB, H)  bf16  emitted hidden states (FC applied outside)
    h_scr/c_scr : (BB, H)      f32   recurrent state carried across the time grid axis
    """
    # Start of a new (independent) batch block -> reset recurrent state to zeros.
    # NOTE: relies on the time axis being the LAST (innermost) grid dimension.
    @pl.when(pl.program_id(1) == 0)
    def _():
        h_scr[...] = jnp.zeros_like(h_scr)
        c_scr[...] = jnp.zeros_like(c_scr)

    H = h_scr.shape[1]
    TT = gx_ref.shape[0]

    def step(i, carry):
        # bf16 MXU operands, f32 accumulation; gate elementwise math stays f32
        # (v5e VPU/EUP have no bf16 support, and f32 state is numerically safer).
        gates = gx_ref[i].astype(jnp.float32) + jnp.dot(
            h_scr[...].astype(jnp.bfloat16), whh_ref[...],
            preferred_element_type=jnp.float32,
        )
        # PyTorch LSTM gate order: input, forget, cell(g), output.  H is a multiple
        # of 128 so each slice is lane-aligned.
        i_g = _sigmoid_via_tanh(gates[:, 0 * H:1 * H])
        f_g = _sigmoid_via_tanh(gates[:, 1 * H:2 * H])
        g_g = jnp.tanh(gates[:, 2 * H:3 * H])
        o_g = _sigmoid_via_tanh(gates[:, 3 * H:4 * H])
        c_new = f_g * c_scr[...] + i_g * g_g
        h_new = o_g * jnp.tanh(c_new)
        c_scr[...] = c_new
        h_scr[...] = h_new
        h_out_ref[i] = h_new.astype(h_out_ref.dtype)
        return carry

    # unroll=2 (not full) keeps the (BB, 4H) f32 gates tensor from blowing the
    # 64-vreg register file at large BB while still giving the scheduler overlap.
    jax.lax.fori_loop(0, TT, step, 0, unroll=2)


def _pick_batch_block(B):
    """Target 32-64 rows per MXU push; keep >=2 batch blocks when B allows (v7x)."""
    if B < 16 or B % 8 != 0:
        return B
    best = 8
    bb = 8
    while bb <= min(64, B // 2):
        if B % bb == 0:
            best = bb
        bb += 8
    return best


# ---------------------------------------------------------------------------
# Forward pass wrapper (mirrors DecoderRNN.forward with num_layers=1).
# ---------------------------------------------------------------------------
def decoder_rnn_forward(features, captions, params, *, time_block=8):
    emb_table = params["emb"]   # (V, E)
    w_ih = params["w_ih"]       # (E, 4H)
    w_hh = params["w_hh"]       # (H, 4H)
    b = params["b"]             # (1, 4H)  == b_ih + b_hh
    w_fc = params["w_fc"]       # (H, V)
    b_fc = params["b_fc"]       # (1, V)

    B, E = features.shape
    H = w_hh.shape[0]
    V = w_fc.shape[1]

    # Glue: embedding gather of captions[:, :-1], prepend image features at t=0.
    embeds = emb_table[captions[:, :-1]]                              # (B, L-1, E)
    inputs = jnp.concatenate([features[:, None, :], embeds], axis=1)  # (B, T, E)
    T = inputs.shape[1]
    x_tm = jnp.transpose(inputs, (1, 0, 2))                           # (T, B, E)

    # (1) Hoisted, time-parallel input projection; bf16 intermediate to halve the
    #     HBM round-trip into the recurrence kernel.
    gate_x = matmul_bias(x_tm.reshape(T * B, E), w_ih, b,
                         out_dtype=jnp.bfloat16)                      # (T*B, 4H) bf16
    gate_x = gate_x.reshape(T, B, 4 * H)

    # (2) Sequential recurrence: TT timesteps per grid step, batch blocks parallel.
    TT = _pick_tile(T, (time_block, 4, 2))
    BB = _pick_batch_block(B)
    budget = _vmem_budget_bytes()
    hs_tm = pl.pallas_call(
        _lstm_recurrence_kernel,
        out_shape=jax.ShapeDtypeStruct((T, B, H), jnp.bfloat16),
        grid_spec=pltpu.PrefetchScalarGridSpec(
            num_scalar_prefetch=0,
            grid=(B // BB, T // TT),
            in_specs=[
                pl.BlockSpec((TT, BB, 4 * H), lambda bb, t: (t, bb, 0)),
                # Index-invariant weight (bf16 halves its VMEM footprint vs f32).
                pl.BlockSpec((H, 4 * H), lambda bb, t: (0, 0)),
            ],
            out_specs=pl.BlockSpec((TT, BB, H), lambda bb, t: (t, bb, 0)),
            scratch_shapes=[
                pltpu.VMEM((BB, H), jnp.float32),  # h (f32 state)
                pltpu.VMEM((BB, H), jnp.float32),  # c (f32 state)
            ],
        ),
        compiler_params=pltpu.CompilerParams(
            # batch blocks independent -> parallel; time carries h/c -> arbitrary.
            dimension_semantics=("parallel", "arbitrary"),
            vmem_limit_bytes=budget,
        ),
    )(gate_x, w_hh.astype(jnp.bfloat16))                              # (T, B, H) bf16

    # (3) Hoisted FC over all B*T rows (bf16 operands, weight streamed once).
    #     Only the small bf16 h tensor is transposed to batch-first so the large
    #     (B, T, V) logits are produced directly in their final layout.
    hs_bf = jnp.transpose(hs_tm, (1, 0, 2)).reshape(B * T, H)         # (B*T, H) bf16
    logits = matmul_bias(hs_bf, w_fc, b_fc,
                         out_dtype=jnp.float32).reshape(B, T, V)      # (B, T, V)
    return logits


# ---------------------------------------------------------------------------
# Pure-JAX reference (lax.scan LSTM) mirroring the same bf16-operand pipeline.
# ---------------------------------------------------------------------------
def _reference_forward(features, captions, params):
    emb_table = params["emb"]
    w_ih, w_hh, b = params["w_ih"], params["w_hh"], params["b"]
    w_fc, b_fc = params["w_fc"], params["b_fc"]
    H = w_hh.shape[0]
    B = features.shape[0]

    embeds = emb_table[captions[:, :-1]]
    inputs = jnp.concatenate([features[:, None, :], embeds], axis=1)
    x_tm = jnp.transpose(inputs, (1, 0, 2))                          # (T, B, E)
    T = x_tm.shape[0]

    w_ih_bf = w_ih.astype(jnp.bfloat16)
    w_hh_bf = w_hh.astype(jnp.bfloat16)
    w_fc_bf = w_fc.astype(jnp.bfloat16)

    gx = jnp.einsum("tbe,eg->tbg", x_tm.astype(jnp.bfloat16), w_ih_bf,
                    preferred_element_type=jnp.float32) + b
    gx = gx.astype(jnp.bfloat16)                                     # bf16 intermediate

    def step(carry, gx_t):
        h, c = carry
        gates = gx_t.astype(jnp.float32) + jnp.dot(
            h.astype(jnp.bfloat16), w_hh_bf, preferred_element_type=jnp.float32)
        i_g = jax.nn.sigmoid(gates[:, 0 * H:1 * H])
        f_g = jax.nn.sigmoid(gates[:, 1 * H:2 * H])
        g_g = jnp.tanh(gates[:, 2 * H:3 * H])
        o_g = jax.nn.sigmoid(gates[:, 3 * H:4 * H])
        c = f_g * c + i_g * g_g
        h = o_g * jnp.tanh(c)
        return (h, c), h.astype(jnp.bfloat16)

    h0 = jnp.zeros((B, H), jnp.float32)
    _, hs = jax.lax.scan(step, (h0, h0), gx)                         # (T, B, H) bf16
    hs_bf = jnp.transpose(hs, (1, 0, 2)).reshape(B * T, H)
    logits = jnp.dot(hs_bf, w_fc_bf, preferred_element_type=jnp.float32) + b_fc
    return logits.reshape(B, T, -1)


def init_params(key, embed_size, hidden_size, vocab_size):
    ks = jax.random.split(key, 7)
    s = 0.1
    emb = jax.random.normal(ks[0], (vocab_size, embed_size), jnp.float32) * s
    w_ih = jax.random.normal(ks[1], (embed_size, 4 * hidden_size), jnp.float32) * s
    w_hh = jax.random.normal(ks[2], (hidden_size, 4 * hidden_size), jnp.float32) * s
    b_ih = jax.random.normal(ks[3], (4 * hidden_size,), jnp.float32) * s
    b_hh = jax.random.normal(ks[4], (4 * hidden_size,), jnp.float32) * s
    w_fc = jax.random.normal(ks[5], (hidden_size, vocab_size), jnp.float32) * s
    b_fc = jax.random.normal(ks[6], (vocab_size,), jnp.float32) * s
    return {
        "emb": emb,
        "w_ih": w_ih,
        "w_hh": w_hh,
        "b": (b_ih + b_hh)[None, :],
        "w_fc": w_fc,
        "b_fc": b_fc[None, :],
    }


if __name__ == "__main__":
    # H multiple of 128 -> lane-aligned gate slices; B=32 -> BB=16 gives two
    # parallel batch blocks (both v7x TensorCores busy) with 16 MXU rows each.
    EMBED, HIDDEN, VOCAB = 32, 128, 256
    B, L = 32, 16  # caption length L -> sequence length T == L

    key = jax.random.PRNGKey(0)
    k_param, k_feat, k_cap = jax.random.split(key, 3)

    params = init_params(k_param, EMBED, HIDDEN, VOCAB)
    features = jax.random.normal(k_feat, (B, EMBED), jnp.float32)
    captions = jax.random.randint(k_cap, (B, L), 0, VOCAB, dtype=jnp.int32)

    out = decoder_rnn_forward(features, captions, params)
    out = jax.block_until_ready(out)

    ref = jax.block_until_ready(_reference_forward(features, captions, params))
    assert out.shape == (B, L, VOCAB), out.shape
    # bf16 MXU operands + bf16 intermediates: tolerance accounts for occasional
    # one-ULP bf16 rounding flips from accumulation-order differences.
    np.testing.assert_allclose(np.asarray(out), np.asarray(ref), rtol=1e-2, atol=1e-2)

    print("KERNEL_OK")
</pallas_src>

<mosaic_0001>
module attributes {stable_mosaic.version = 11 : i64} {
  func.func @_matmul_bias_kernel(%arg0: i32, %arg1: i32, %arg2: memref<512x32xbf16, #tpu.memory_space<vmem>>, %arg3: memref<32x512xbf16, #tpu.memory_space<vmem>>, %arg4: memref<1x512xf32, #tpu.memory_space<vmem>>, %arg5: memref<512x512xbf16, #tpu.memory_space<vmem>>) attributes {dimension_semantics = [#tpu.dimension_semantics<parallel>, #tpu.dimension_semantics<parallel>], iteration_bounds = array<i64: 1, 1>, scalar_prefetch = 0 : i64, scratch_operands = 0 : i64, tpu.core_type = #tpu.core_type<tc>, window_params = [{transform_indices = @transform_0, window_bounds = array<i64: 512, 32>}, {transform_indices = @transform_1, window_bounds = array<i64: 32, 512>}, {transform_indices = @transform_2, window_bounds = array<i64: 1, 512>}, {transform_indices = @transform_3, window_bounds = array<i64: 512, 512>}]} {
    %c0 = arith.constant 0 : index
    %c0_0 = arith.constant 0 : index
    %0 = vector.load %arg2[%c0, %c0_0] : memref<512x32xbf16, #tpu.memory_space<vmem>>, vector<512x32xbf16>
    %c0_1 = arith.constant 0 : index
    %c0_2 = arith.constant 0 : index
    %1 = vector.load %arg3[%c0_1, %c0_2] : memref<32x512xbf16, #tpu.memory_space<vmem>>, vector<32x512xbf16>
    %cst = arith.constant dense<0.000000e+00> : vector<512x512xf32>
    %2 = tpu.matmul %0, %1, %cst {dimension_numbers = #tpu.dot_dimension_numbers<[1], [0], [0], [1], [0, 0, 1, 1], [], []>} : vector<512x32xbf16>, vector<32x512xbf16>, vector<512x512xf32> -> vector<512x512xf32>
    %c0_3 = arith.constant 0 : index
    %c0_4 = arith.constant 0 : index
    %3 = vector.load %arg4[%c0_3, %c0_4] : memref<1x512xf32, #tpu.memory_space<vmem>>, vector<1x512xf32>
    %4 = vector.broadcast %3 : vector<1x512xf32> to vector<512x512xf32>
    %5 = arith.addf %2, %4 : vector<512x512xf32>
    %6 = arith.truncf %5 : vector<512x512xf32> to vector<512x512xbf16>
    %c0_5 = arith.constant 0 : index
    %c0_6 = arith.constant 0 : index
    %7 = vector.load %arg5[%c0_5, %c0_6] : memref<512x512xbf16, #tpu.memory_space<vmem>>, vector<512x512xbf16>
    tpu.vector_store %arg5[%c0_5, %c0_6], %6 {strides = array<i32>} : memref<512x512xbf16, #tpu.memory_space<vmem>>, vector<512x512xbf16>,
    return
  }
  func.func @transform_0(%arg0: i32, %arg1: i32) -> (i32, i32) {
    %c0_i32 = arith.constant 0 : i32
    %c0_i32_0 = arith.constant 0 : i32
    return %arg1, %c0_i32 : i32, i32
  }
  func.func @transform_1(%arg0: i32, %arg1: i32) -> (i32, i32) {
    %c0_i32 = arith.constant 0 : i32
    %c0_i32_0 = arith.constant 0 : i32
    return %c0_i32, %arg0 : i32, i32
  }
  func.func @transform_2(%arg0: i32, %arg1: i32) -> (i32, i32) {
    %c0_i32 = arith.constant 0 : i32
    %c0_i32_0 = arith.constant 0 : i32
    return %c0_i32, %arg0 : i32, i32
  }
  func.func @transform_3(%arg0: i32, %arg1: i32) -> (i32, i32) {
    %c0_i32 = arith.constant 0 : i32
    return %arg1, %arg0 : i32, i32
  }
}

</mosaic_0001>

<llo_original>
// kernel: tpu_custom_call.1
$region0: #{tpu_custom_call.1}
  #allocation0 [shape = 'u32[]', space=smem, size = 0x4, offset = 0x4, fixed_abs, tag = 'smem constant byte address 0x4 - core index']
  #allocation1 [shape = 'u32[144,128]{1,0:T(1,128)}', space=vmem, size = 0x12000, scoped, tag = 'internal scratch']
  %s0 = inlined_call_operand.vmem [shape: bf16[512,32], index: 0, kind: input, shape index: {}]
  %s1 = inlined_call_operand.vmem [shape: bf16[32,512], index: 1, kind: input, shape index: {}]
  %s2 = inlined_call_operand.vmem [shape: f32[1,512], index: 2, kind: input, shape index: {}]
  %s3 = inlined_call_operand.hbm [shape: bf16[512,512], index: 3, kind: output, shape index: {}]
  %s4 = sld [smem:[#allocation0]]
  $region22: #{tpu_custom_call.1} parent=0
    _
  %s6 = ssub.s32 1, %s4
  %s7 = scalar_select 0, %s6, %s4
  $region1: #{tpu_custom_call.1} parent=0
    #allocation2 [shape = 'u8[524288]{0}', space=vmem, size = 0x80000, scoped, tag = 'output window, operand 0, single buffered']
    #allocation3 [shape = 's32[1]{0}', space=sflag, size = 0x4, scoped, tag = 'scoped memory for tpu_custom_call.1']
    %8 = vsyncpa [#allocation3], 0
    // Predicated region
    $region2: #{tpu_custom_call.1} parent=1 // pred_check
      _
    $region3: #{tpu_custom_call.1} parent=1 // pred_check_branch
      %10 = sbr.rel (0) target = $region5
    $region4: #{tpu_custom_call.1} parent=1 // pred_region
      _
    $region5: #{tpu_custom_call.1} parent=1 // pred_fallthru
      _
    // Predicated region
    $region6: #{tpu_custom_call.1} parent=1 // pred_check
      _
    $region7: #{tpu_custom_call.1} parent=1 // pred_check_branch
      %12 = sbr.rel (0) target = $region9
    $region8: #{tpu_custom_call.1} parent=1 // pred_region
      _
    $region9: #{tpu_custom_call.1} parent=1 // pred_fallthru
      _
    // Predicated region
    $region10: #{tpu_custom_call.1} parent=1 // pred_check
      _
    $region11: #{tpu_custom_call.1} parent=1 // pred_check_branch
      %14 = sbr.rel (0) target = $region13
    $region12: #{tpu_custom_call.1} parent=1 // pred_region
      _
    $region13: #{tpu_custom_call.1} parent=1 // pred_fallthru
      _
    %v16 = vld [vmem:[%s0] sm:$0xf]
    %v17 = vld [vmem:[%s0 + $0x4] sm:$0xf]
    %v18 = vld [vmem:[%s0 + $0x8] sm:$0xf]
    %v19 = vld [vmem:[%s0 + $0xc] sm:$0xf]
    %v20 = vld [vmem:[%s0 + $0x10] sm:$0xf]
    %v21 = vld [vmem:[%s0 + $0x14] sm:$0xf]
    %v22 = vld [vmem:[%s0 + $0x18] sm:$0xf]
    %v23 = vld [vmem:[%s0 + $0x1c] sm:$0xf]
    %v24 = vld [vmem:[%s0 + $0x20] sm:$0xf]
    %v25 = vld [vmem:[%s0 + $0x24] sm:$0xf]
    %v26 = vld [vmem:[%s0 + $0x28] sm:$0xf]
    %v27 = vld [vmem:[%s0 + $0x2c] sm:$0xf]
    %v28 = vld [vmem:[%s0 + $0x30] sm:$0xf]
    %v29 = vld [vmem:[%s0 + $0x34] sm:$0xf]
    %v30 = vld [vmem:[%s0 + $0x38] sm:$0xf]
    %v31 = vld [vmem:[%s0 + $0x3c] sm:$0xf]
    %v32 = vld [vmem:[%s0 + $0x40] sm:$0xf]
    %v33 = vld [vmem:[%s0 + $0x44] sm:$0xf]
    %v34 = vld [vmem:[%s0 + $0x48] sm:$0xf]
    %v35 = vld [vmem:[%s0 + $0x4c] sm:$0xf]
    %v36 = vld [vmem:[%s0 + $0x50] sm:$0xf]
    %v37 = vld [vmem:[%s0 + $0x54] sm:$0xf]
    %v38 = vld [vmem:[%s0 + $0x58] sm:$0xf]
    %v39 = vld [vmem:[%s0 + $0x5c] sm:$0xf]
    %v40 = vld [vmem:[%s0 + $0x60] sm:$0xf]
    %v41 = vld [vmem:[%s0 + $0x64] sm:$0xf]
    %v42 = vld [vmem:[%s0 + $0x68] sm:$0xf]
    %v43 = vld [vmem:[%s0 + $0x6c] sm:$0xf]
    %v44 = vld [vmem:[%s0 + $0x70] sm:$0xf]
    %v45 = vld [vmem:[%s0 + $0x74] sm:$0xf]
    %v46 = vld [vmem:[%s0 + $0x78] sm:$0xf]
    %v47 = vld [vmem:[%s0 + $0x7c] sm:$0xf]
    %v48 = vld [vmem:[%s0 + $0x80] sm:$0xf]
    %v49 = vld [vmem:[%s0 + $0x84] sm:$0xf]
    %v50 = vld [vmem:[%s0 + $0x88] sm:$0xf]
    %v51 = vld [vmem:[%s0 + $0x8c] sm:$0xf]
    %v52 = vld [vmem:[%s0 + $0x90] sm:$0xf]
    %v53 = vld [vmem:[%s0 + $0x94] sm:$0xf]
    %v54 = vld [vmem:[%s0 + $0x98] sm:$0xf]
    %v55 = vld [vmem:[%s0 + $0x9c] sm:$0xf]
    %v56 = vld [vmem:[%s0 + $0xa0] sm:$0xf]
    %v57 = vld [vmem:[%s0 + $0xa4] sm:$0xf]
    %v58 = vld [vmem:[%s0 + $0xa8] sm:$0xf]
    %v59 = vld [vmem:[%s0 + $0xac] sm:$0xf]
    %v60 = vld [vmem:[%s0 + $0xb0] sm:$0xf]
    %v61 = vld [vmem:[%s0 + $0xb4] sm:$0xf]
    %v62 = vld [vmem:[%s0 + $0xb8] sm:$0xf]
    %v63 = vld [vmem:[%s0 + $0xbc] sm:$0xf]
    %v64 = vld [vmem:[%s0 + $0xc0] sm:$0xf]
    %v65 = vld [vmem:[%s0 + $0xc4] sm:$0xf]
    %v66 = vld [vmem:[%s0 + $0xc8] sm:$0xf]
    %v67 = vld [vmem:[%s0 + $0xcc] sm:$0xf]
    %v68 = vld [vmem:[%s0 + $0xd0] sm:$0xf]
    %v69 = vld [vmem:[%s0 + $0xd4] sm:$0xf]
    %v70 = vld [vmem:[%s0 + $0xd8] sm:$0xf]
    %v71 = vld [vmem:[%s0 + $0xdc] sm:$0xf]
    %v72 = vld [vmem:[%s0 + $0xe0] sm:$0xf]
    %v73 = vld [vmem:[%s0 + $0xe4] sm:$0xf]
    %v74 = vld [vmem:[%s0 + $0xe8] sm:$0xf]
    %v75 = vld [vmem:[%s0 + $0xec] sm:$0xf]
    %v76 = vld [vmem:[%s0 + $0xf0] sm:$0xf]
    %v77 = vld [vmem:[%s0 + $0xf4] sm:$0xf]
    %v78 = vld [vmem:[%s0 + $0xf8] sm:$0xf]
    %v79 = vld [vmem:[%s0 + $0xfc] sm:$0xf]
    %v80 = vld [vmem:[%s1] sm:$0xff]
    %v81 = vld [vmem:[%s1 + $0x8] sm:$0xff]
    %v82 = vld [vmem:[%s1 + $0x10] sm:$0xff]
    %v83 = vld [vmem:[%s1 + $0x18] sm:$0xff]
    %v84 = vld [vmem:[%s1 + $0x20] sm:$0xff]
    %v85 = vld [vmem:[%s1 + $0x28] sm:$0xff]
    %v86 = vld [vmem:[%s1 + $0x30] sm:$0xff]
    %v87 = vld [vmem:[%s1 + $0x38] sm:$0xff]
    %v88 = vld [vmem:[%s2] sm:$0xf]
    %v90 = vlaneseq
    %v91 = vshrl.u32 %v90, 7
    %v92 = vsub.s32 0, %v91
    %v93 = vrot.slane %v88, %v92
    %v94 = vlaneseq
    %v95 = vshrl.u32 %v94, 7
    %v96 = vsub.s32 1, %v95
    %v97 = vrot.slane %v88, %v96
    %v98 = vlaneseq
    %v99 = vshrl.u32 %v98, 7
    %v100 = vsub.s32 2, %v99
    %v101 = vrot.slane %v88, %v100
    %v102 = vlaneseq
    %v103 = vshrl.u32 %v102, 7
    %v104 = vsub.s32 3, %v103
    %v105 = vrot.slane %v88, %v104
    %v174 = vunpack.c.l.b16 %v16
    %v175 = vunpack.c.l.b16 %v17
    %v176 = vunpack.c.l.b16 %v18
    %v177 = vunpack.c.l.b16 %v19
    %v178 = vunpack.c.l.b16 %v20
    %v179 = vunpack.c.l.b16 %v21
    %v180 = vunpack.c.l.b16 %v22
    %v181 = vunpack.c.l.b16 %v23
    %v182 = vunpack.c.l.b16 %v24
    %v183 = vunpack.c.l.b16 %v25
    %v184 = vunpack.c.l.b16 %v26
    %v185 = vunpack.c.l.b16 %v27
    %v186 = vunpack.c.l.b16 %v28
    %v187 = vunpack.c.l.b16 %v29
    %v188 = vunpack.c.l.b16 %v30
    %v189 = vunpack.c.l.b16 %v31
    %v190 = vunpack.c.l.b16 %v32
    %v191 = vunpack.c.l.b16 %v33
    %v192 = vunpack.c.l.b16 %v34
    %v193 = vunpack.c.l.b16 %v35
    %v194 = vunpack.c.l.b16 %v36
    %v195 = vunpack.c.l.b16 %v37
    %v196 = vunpack.c.l.b16 %v38
    %v197 = vunpack.c.l.b16 %v39
    %v198 = vunpack.c.l.b16 %v40
    %v199 = vunpack.c.l.b16 %v41
    %v200 = vunpack.c.l.b16 %v42
    %v201 = vunpack.c.l.b16 %v43
    %v202 = vunpack.c.l.b16 %v44
    %v203 = vunpack.c.l.b16 %v45
    %v204 = vunpack.c.l.b16 %v46
    %v205 = vunpack.c.l.b16 %v47
    %v206 = vunpack.c.l.b16 %v48
    %v207 = vunpack.c.l.b16 %v49
    %v208 = vunpack.c.l.b16 %v50
    %v209 = vunpack.c.l.b16 %v51
    %v210 = vunpack.c.l.b16 %v52
    %v211 = vunpack.c.l.b16 %v53
    %v212 = vunpack.c.l.b16 %v54
    %v213 = vunpack.c.l.b16 %v55
    %v214 = vunpack.c.l.b16 %v56
    %v215 = vunpack.c.l.b16 %v57
    %v216 = vunpack.c.l.b16 %v58
    %v217 = vunpack.c.l.b16 %v59
    %v218 = vunpack.c.l.b16 %v60
    %v219 = vunpack.c.l.b16 %v61
    %v220 = vunpack.c.l.b16 %v62
    %v221 = vunpack.c.l.b16 %v63
    %v222 = vunpack.c.l.b16 %v64
    %v223 = vunpack.c.l.b16 %v65
    %v224 = vunpack.c.l.b16 %v66
    %v225 = vunpack.c.l.b16 %v67
    %v226 = vunpack.c.l.b16 %v68
    %v227 = vunpack.c.l.b16 %v69
    %v228 = vunpack.c.l.b16 %v70
    %v229 = vunpack.c.l.b16 %v71
    %v230 = vunpack.c.l.b16 %v72
    %v231 = vunpack.c.l.b16 %v73
    %v232 = vunpack.c.l.b16 %v74
    %v233 = vunpack.c.l.b16 %v75
    %v234 = vunpack.c.l.b16 %v76
    %v235 = vunpack.c.l.b16 %v77
    %v236 = vunpack.c.l.b16 %v78
    %v237 = vunpack.c.l.b16 %v79
    %v238 = vpack.c.b16 %v175, %v174
    %v239 = vpack.c.b16 %v177, %v176
    %v240 = vpack.c.b16 %v179, %v178
    %v241 = vpack.c.b16 %v181, %v180
    %v242 = vpack.c.b16 %v183, %v182
    %v243 = vpack.c.b16 %v185, %v184
    %v244 = vpack.c.b16 %v187, %v186
    %v245 = vpack.c.b16 %v189, %v188
    %v246 = vpack.c.b16 %v191, %v190
    %v247 = vpack.c.b16 %v193, %v192
    %v248 = vpack.c.b16 %v195, %v194
    %v249 = vpack.c.b16 %v197, %v196
    %v250 = vpack.c.b16 %v199, %v198
    %v251 = vpack.c.b16 %v201, %v200
    %v252 = vpack.c.b16 %v203, %v202
    %v253 = vpack.c.b16 %v205, %v204
    %v254 = vpack.c.b16 %v207, %v206
    %v255 = vpack.c.b16 %v209, %v208
    %v256 = vpack.c.b16 %v211, %v210
    %v257 = vpack.c.b16 %v213, %v212
    %v258 = vpack.c.b16 %v215, %v214
    %v259 = vpack.c.b16 %v217, %v216
    %v260 = vpack.c.b16 %v219, %v218
    %v261 = vpack.c.b16 %v221, %v220
    %v262 = vpack.c.b16 %v223, %v222
    %v263 = vpack.c.b16 %v225, %v224
    %v264 = vpack.c.b16 %v227, %v226
    %v265 = vpack.c.b16 %v229, %v228
    %v266 = vpack.c.b16 %v231, %v230
    %v267 = vpack.c.b16 %v233, %v232
    %v268 = vpack.c.b16 %v235, %v234
    %v269 = vpack.c.b16 %v237, %v236
    %v278 = vunpack.c.l.b16 %v80
    %v279 = vunpack.c.h.b16 %v80
    %v280 = vunpack.c.l.b16 %v81
    %v281 = vunpack.c.h.b16 %v81
    %v282 = vunpack.c.l.b16 %v82
    %v283 = vunpack.c.h.b16 %v82
    %v284 = vunpack.c.l.b16 %v83
    %v285 = vunpack.c.h.b16 %v83
    %v286 = vunpack.c.l.b16 %v84
    %v287 = vunpack.c.h.b16 %v84
    %v288 = vunpack.c.l.b16 %v85
    %v289 = vunpack.c.h.b16 %v85
    %v290 = vunpack.c.l.b16 %v86
    %v291 = vunpack.c.h.b16 %v86
    %v292 = vunpack.c.l.b16 %v87
    %v293 = vunpack.c.h.b16 %v87
    %v294 = vpack.c.b16 %v282, %v278
    %v295 = vpack.c.b16 %v283, %v279
    %v296 = vpack.c.b16 %v284, %v280
    %v297 = vpack.c.b16 %v285, %v281
    %v298 = vpack.c.b16 %v290, %v286
    %v299 = vpack.c.b16 %v291, %v287
    %v300 = vpack.c.b16 %v292, %v288
    %v301 = vpack.c.b16 %v293, %v289
    %vm310 = vcmask 261120
    %v312 = vsel %vm310, %v238, 0
    %v315 = vsel %vm310, %v239, 0
    %v318 = vsel %vm310, %v240, 0
    %v321 = vsel %vm310, %v241, 0
    %v324 = vsel %vm310, %v242, 0
    %v327 = vsel %vm310, %v243, 0
    %v330 = vsel %vm310, %v244, 0
    %v333 = vsel %vm310, %v245, 0
    %v336 = vsel %vm310, %v246, 0
    %v339 = vsel %vm310, %v247, 0
    %v342 = vsel %vm310, %v248, 0
    %v345 = vsel %vm310, %v249, 0
    %v348 = vsel %vm310, %v250, 0
    %v351 = vsel %vm310, %v251, 0
    %v354 = vsel %vm310, %v252, 0
    %v357 = vsel %vm310, %v253, 0
    %v360 = vsel %vm310, %v254, 0
    %v363 = vsel %vm310, %v255, 0
    %v366 = vsel %vm310, %v256, 0
    %v369 = vsel %vm310, %v257, 0
    %v372 = vsel %vm310, %v258, 0
    %v375 = vsel %vm310, %v259, 0
    %v378 = vsel %vm310, %v260, 0
    %v381 = vsel %vm310, %v261, 0
    %v384 = vsel %vm310, %v262, 0
    %v387 = vsel %vm310, %v263, 0
    %v390 = vsel %vm310, %v264, 0
    %v393 = vsel %vm310, %v265, 0
    %v396 = vsel %vm310, %v266, 0
    %v399 = vsel %vm310, %v267, 0
    %v402 = vsel %vm310, %v268, 0
    %v405 = vsel %vm310, %v269, 0
    %407 = vmatprep.subr.bf16.mxu0 0
    %408 = vmatpush1.bf16.msra.mxu0 0
    %409 = vmatprep.subr.bf16.mxu0 0
    %410 = vmatpush1.bf16.msra.mxu0 0
    %411 = vmatprep.subr.bf16.mxu0 0
    %412 = vmatpush1.bf16.msra.mxu0 0
    %413 = vmatprep.subr.bf16.mxu0 0
    %414 = vmatpush1.bf16.msra.mxu0 0
    %415 = vmatprep.subr.bf16.mxu0 0
    %416 = vmatpush1.bf16.msra.mxu0 0
    %417 = vmatprep.subr.bf16.mxu0 0
    %418 = vmatpush1.bf16.msra.mxu0 0
    %419 = vmatprep.subr.bf16.mxu0 %v299
    %420 = vmatpush1.bf16.msra.mxu0 %v298
    %421 = vmatprep.subr.bf16.mxu0 %v295
    %422 = vmatpush1.bf16.msra.mxu0 %v294
    %423 = vmatprep.subr.bf16.mxu0 0
    %424 = vmatpush2.bf16.msra.mxu0 0
    %425 = vmatprep.subr.bf16.mxu0 0
    %426 = vmatpush2.bf16.msra.mxu0 0
    %427 = vmatprep.subr.bf16.mxu0 0
    %428 = vmatpush2.bf16.msra.mxu0 0
    %429 = vmatprep.subr.bf16.mxu0 0
    %430 = vmatpush2.bf16.msra.mxu0 0
    %431 = vmatprep.subr.bf16.mxu0 0
    %432 = vmatpush2.bf16.msra.mxu0 0
    %433 = vmatprep.subr.bf16.mxu0 0
    %434 = vmatpush2.bf16.msra.mxu0 0
    %435 = vmatprep.subr.bf16.mxu0 0
    %436 = vmatpush2.bf16.msra.mxu0 0
    %437 = vmatprep.subr.bf16.mxu0 0
    %438 = vmatpush2.bf16.msra.mxu0 0
    %439 = vmatprep.mubr.bf16.mxu0 0
    %440 = vmatmul.mubr.bf16.gmra.mxu0 %v312
    %v441 = vpop.f32.mrf.mxu0
    %v442 = vadd.f32 %v93, %v441
    %v443 = vpop.f32.mrf.mxu0
    %v444 = vadd.f32 %v97, %v443
    %v445 = vpop.f32.mrf.mxu0
    %v446 = vadd.f32 %v93, %v445
    %v447 = vpop.f32.mrf.mxu0
    %v448 = vadd.f32 %v97, %v447
    %449 = vmatprep.mubr.bf16.mxu0 0
    %450 = vmatmul.mubr.bf16.gmra.mxu0 %v315
    %v451 = vpop.f32.mrf.mxu0
    %v452 = vadd.f32 %v93, %v451
    %v453 = vpop.f32.mrf.mxu0
    %v454 = vadd.f32 %v97, %v453
    %v455 = vpop.f32.mrf.mxu0
    %v456 = vadd.f32 %v93, %v455
    %v457 = vpop.f32.mrf.mxu0
    %v458 = vadd.f32 %v97, %v457
    %459 = vmatprep.mubr.bf16.mxu0 0
    %460 = vmatmul.mubr.bf16.gmra.mxu0 %v318
    %v461 = vpop.f32.mrf.mxu0
    %v462 = vadd.f32 %v93, %v461
    %v463 = vpop.f32.mrf.mxu0
    %v464 = vadd.f32 %v97, %v463
    %v465 = vpop.f32.mrf.mxu0
    %v466 = vadd.f32 %v93, %v465
    %v467 = vpop.f32.mrf.mxu0
    %v468 = vadd.f32 %v97, %v467
    %469 = vmatprep.mubr.bf16.mxu0 0
    %470 = vmatmul.mubr.bf16.gmra.mxu0 %v321
    %v471 = vpop.f32.mrf.mxu0
    %v472 = vadd.f32 %v93, %v471
    %v473 = vpop.f32.mrf.mxu0
    %v474 = vadd.f32 %v97, %v473
    %v475 = vpop.f32.mrf.mxu0
    %v476 = vadd.f32 %v93, %v475
    %v477 = vpop.f32.mrf.mxu0
    %v478 = vadd.f32 %v97, %v477
    %479 = vmatprep.mubr.bf16.mxu0 0
    %480 = vmatmul.mubr.bf16.gmra.mxu0 %v324
    %v481 = vpop.f32.mrf.mxu0
    %v482 = vadd.f32 %v93, %v481
    %v483 = vpop.f32.mrf.mxu0
    %v484 = vadd.f32 %v97, %v483
    %v485 = vpop.f32.mrf.mxu0
    %v486 = vadd.f32 %v93, %v485
    %v487 = vpop.f32.mrf.mxu0
    %v488 = vadd.f32 %v97, %v487
    %489 = vmatprep.mubr.bf16.mxu0 0
    %490 = vmatmul.mubr.bf16.gmra.mxu0 %v327
    %v491 = vpop.f32.mrf.mxu0
    %v492 = vadd.f32 %v93, %v491
    %v493 = vpop.f32.mrf.mxu0
    %v494 = vadd.f32 %v97, %v493
    %v495 = vpop.f32.mrf.mxu0
    %v496 = vadd.f32 %v93, %v495
    %v497 = vpop.f32.mrf.mxu0
    %v498 = vadd.f32 %v97, %v497
    %499 = vmatprep.mubr.bf16.mxu0 0
    %500 = vmatmul.mubr.bf16.gmra.mxu0 %v330
    %v501 = vpop.f32.mrf.mxu0
    %v502 = vadd.f32 %v93, %v501
    %v503 = vpop.f32.mrf.mxu0
    %v504 = vadd.f32 %v97, %v503
    %v505 = vpop.f32.mrf.mxu0
    %v506 = vadd.f32 %v93, %v505
    %v507 = vpop.f32.mrf.mxu0
    %v508 = vadd.f32 %v97, %v507
    %509 = vmatprep.mubr.bf16.mxu0 0
    %510 = vmatmul.mubr.bf16.gmra.mxu0 %v333
    %v511 = vpop.f32.mrf.mxu0
    %v512 = vadd.f32 %v93, %v511
    %v513 = vpop.f32.mrf.mxu0
    %v514 = vadd.f32 %v97, %v513
    %v515 = vpop.f32.mrf.mxu0
    %v516 = vadd.f32 %v93, %v515
    %v517 = vpop.f32.mrf.mxu0
    %v518 = vadd.f32 %v97, %v517
    %519 = vmatprep.mubr.bf16.mxu0 0
    %520 = vmatmul.mubr.bf16.gmra.mxu0 %v336
    %v521 = vpop.f32.mrf.mxu0
    %v522 = vadd.f32 %v93, %v521
    %v523 = vpop.f32.mrf.mxu0
    %v524 = vadd.f32 %v97, %v523
    %v525 = vpop.f32.mrf.mxu0
    %v526 = vadd.f32 %v93, %v525
    %v527 = vpop.f32.mrf.mxu0
    %v528 = vadd.f32 %v97, %v527
    %529 = vmatprep.mubr.bf16.mxu0 0
    %530 = vmatmul.mubr.bf16.gmra.mxu0 %v339
    %v531 = vpop.f32.mrf.mxu0
    %v532 = vadd.f32 %v93, %v531
    %v533 = vpop.f32.mrf.mxu0
    %v534 = vadd.f32 %v97, %v533
    %v535 = vpop.f32.mrf.mxu0
    %v536 = vadd.f32 %v93, %v535
    %v537 = vpop.f32.mrf.mxu0
    %v538 = vadd.f32 %v97, %v537
    %539 = vmatprep.mubr.bf16.mxu0 0
    %540 = vmatmul.mubr.bf16.gmra.mxu0 %v342
    %v541 = vpop.f32.mrf.mxu0
    %v542 = vadd.f32 %v93, %v541
    %v543 = vpop.f32.mrf.mxu0
    %v544 = vadd.f32 %v97, %v543
    %v545 = vpop.f32.mrf.mxu0
    %v546 = vadd.f32 %v93, %v545
    %v547 = vpop.f32.mrf.mxu0
    %v548 = vadd.f32 %v97, %v547
    %549 = vmatprep.mubr.bf16.mxu0 0
    %550 = vmatmul.mubr.bf16.gmra.mxu0 %v345
    %v551 = vpop.f32.mrf.mxu0
    %v552 = vadd.f32 %v93, %v551
    %v553 = vpop.f32.mrf.mxu0
    %v554 = vadd.f32 %v97, %v553
    %v555 = vpop.f32.mrf.mxu0
    %v556 = vadd.f32 %v93, %v555
    %v557 = vpop.f32.mrf.mxu0
    %v558 = vadd.f32 %v97, %v557
    %559 = vmatprep.mubr.bf16.mxu0 0
    %560 = vmatmul.mubr.bf16.gmra.mxu0 %v348
    %v561 = vpop.f32.mrf.mxu0
    %v562 = vadd.f32 %v93, %v561
    %v563 = vpop.f32.mrf.mxu0
    %v564 = vadd.f32 %v97, %v563
    %v565 = vpop.f32.mrf.mxu0
    %v566 = vadd.f32 %v93, %v565
    %v567 = vpop.f32.mrf.mxu0
    %v568 = vadd.f32 %v97, %v567
    %569 = vmatprep.mubr.bf16.mxu0 0
    %570 = vmatmul.mubr.bf16.gmra.mxu0 %v351
    %v571 = vpop.f32.mrf.mxu0
    %v572 = vadd.f32 %v93, %v571
    %v573 = vpop.f32.mrf.mxu0
    %v574 = vadd.f32 %v97, %v573
    %v575 = vpop.f32.mrf.mxu0
    %v576 = vadd.f32 %v93, %v575
    %v577 = vpop.f32.mrf.mxu0
    %v578 = vadd.f32 %v97, %v577
    %579 = vmatprep.mubr.bf16.mxu0 0
    %580 = vmatmul.mubr.bf16.gmra.mxu0 %v354
    %v581 = vpop.f32.mrf.mxu0
    %v582 = vadd.f32 %v93, %v581
    %v583 = vpop.f32.mrf.mxu0
    %v584 = vadd.f32 %v97, %v583
    %v585 = vpop.f32.mrf.mxu0
    %v586 = vadd.f32 %v93, %v585
    %v587 = vpop.f32.mrf.mxu0
    %v588 = vadd.f32 %v97, %v587
    %589 = vmatprep.mubr.bf16.mxu0 0
    %590 = vmatmul.mubr.bf16.gmra.mxu0 %v357
    %v591 = vpop.f32.mrf.mxu0
    %v592 = vadd.f32 %v93, %v591
    %v593 = vpop.f32.mrf.mxu0
    %v594 = vadd.f32 %v97, %v593
    %v595 = vpop.f32.mrf.mxu0
    %v596 = vadd.f32 %v93, %v595
    %v597 = vpop.f32.mrf.mxu0
    %v598 = vadd.f32 %v97, %v597
    %599 = vmatprep.mubr.bf16.mxu0 0
    %600 = vmatmul.mubr.bf16.gmra.mxu0 %v360
    %v601 = vpop.f32.mrf.mxu0
    %v602 = vadd.f32 %v93, %v601
    %v603 = vpop.f32.mrf.mxu0
    %v604 = vadd.f32 %v97, %v603
    %v605 = vpop.f32.mrf.mxu0
    %v606 = vadd.f32 %v93, %v605
    %v607 = vpop.f32.mrf.mxu0
    %v608 = vadd.f32 %v97, %v607
    %609 = vmatprep.mubr.bf16.mxu0 0
    %610 = vmatmul.mubr.bf16.gmra.mxu0 %v363
    %v611 = vpop.f32.mrf.mxu0
    %v612 = vadd.f32 %v93, %v611
    %v613 = vpop.f32.mrf.mxu0
    %v614 = vadd.f32 %v97, %v613
    %v615 = vpop.f32.mrf.mxu0
    %v616 = vadd.f32 %v93, %v615
    %v617 = vpop.f32.mrf.mxu0
    %v618 = vadd.f32 %v97, %v617
    %619 = vmatprep.mubr.bf16.mxu0 0
    %620 = vmatmul.mubr.bf16.gmra.mxu0 %v366
    %v621 = vpop.f32.mrf.mxu0
    %v622 = vadd.f32 %v93, %v621
    %v623 = vpop.f32.mrf.mxu0
    %v624 = vadd.f32 %v97, %v623
    %v625 = vpop.f32.mrf.mxu0
    %v626 = vadd.f32 %v93, %v625
    %v627 = vpop.f32.mrf.mxu0
    %v628 = vadd.f32 %v97, %v627
    %629 = vmatprep.mubr.bf16.mxu0 0
    %630 = vmatmul.mubr.bf16.gmra.mxu0 %v369
    %v631 = vpop.f32.mrf.mxu0
    %v632 = vadd.f32 %v93, %v631
    %v633 = vpop.f32.mrf.mxu0
    %v634 = vadd.f32 %v97, %v633
    %v635 = vpop.f32.mrf.mxu0
    %v636 = vadd.f32 %v93, %v635
    %v637 = vpop.f32.mrf.mxu0
    %v638 = vadd.f32 %v97, %v637
    %639 = vmatprep.mubr.bf16.mxu0 0
    %640 = vmatmul.mubr.bf16.gmra.mxu0 %v372
    %v641 = vpop.f32.mrf.mxu0
    %v642 = vadd.f32 %v93, %v641
    %v643 = vpop.f32.mrf.mxu0
    %v644 = vadd.f32 %v97, %v643
    %v645 = vpop.f32.mrf.mxu0
    %v646 = vadd.f32 %v93, %v645
    %v647 = vpop.f32.mrf.mxu0
    %v648 = vadd.f32 %v97, %v647
    %649 = vmatprep.mubr.bf16.mxu0 0
    %650 = vmatmul.mubr.bf16.gmra.mxu0 %v375
    %v651 = vpop.f32.mrf.mxu0
    %v652 = vadd.f32 %v93, %v651
    %v653 = vpop.f32.mrf.mxu0
    %v654 = vadd.f32 %v97, %v653
    %v655 = vpop.f32.mrf.mxu0
    %v656 = vadd.f32 %v93, %v655
    %v657 = vpop.f32.mrf.mxu0
    %v658 = vadd.f32 %v97, %v657
    %659 = vmatprep.mubr.bf16.mxu0 0
    %660 = vmatmul.mubr.bf16.gmra.mxu0 %v378
    %v661 = vpop.f32.mrf.mxu0
    %v662 = vadd.f32 %v93, %v661
    %v663 = vpop.f32.mrf.mxu0
    %v664 = vadd.f32 %v97, %v663
    %v665 = vpop.f32.mrf.mxu0
    %v666 = vadd.f32 %v93, %v665
    %v667 = vpop.f32.mrf.mxu0
    %v668 = vadd.f32 %v97, %v667
    %669 = vmatprep.mubr.bf16.mxu0 0
    %670 = vmatmul.mubr.bf16.gmra.mxu0 %v381
    %v671 = vpop.f32.mrf.mxu0
    %v672 = vadd.f32 %v93, %v671
    %v673 = vpop.f32.mrf.mxu0
    %v674 = vadd.f32 %v97, %v673
    %v675 = vpop.f32.mrf.mxu0
    %v676 = vadd.f32 %v93, %v675
    %v677 = vpop.f32.mrf.mxu0
    %v678 = vadd.f32 %v97, %v677
    %679 = vmatprep.mubr.bf16.mxu0 0
    %680 = vmatmul.mubr.bf16.gmra.mxu0 %v384
    %v681 = vpop.f32.mrf.mxu0
    %v682 = vadd.f32 %v93, %v681
    %v683 = vpop.f32.mrf.mxu0
    %v684 = vadd.f32 %v97, %v683
    %v685 = vpop.f32.mrf.mxu0
    %v686 = vadd.f32 %v93, %v685
    %v687 = vpop.f32.mrf.mxu0
    %v688 = vadd.f32 %v97, %v687
    %689 = vmatprep.mubr.bf16.mxu0 0
    %690 = vmatmul.mubr.bf16.gmra.mxu0 %v387
    %v691 = vpop.f32.mrf.mxu0
    %v692 = vadd.f32 %v93, %v691
    %v693 = vpop.f32.mrf.mxu0
    %v694 = vadd.f32 %v97, %v693
    %v695 = vpop.f32.mrf.mxu0
    %v696 = vadd.f32 %v93, %v695
    %v697 = vpop.f32.mrf.mxu0
    %v698 = vadd.f32 %v97, %v697
    %699 = vmatprep.mubr.bf16.mxu0 0
    %700 = vmatmul.mubr.bf16.gmra.mxu0 %v390
    %v701 = vpop.f32.mrf.mxu0
    %v702 = vadd.f32 %v93, %v701
    %v703 = vpop.f32.mrf.mxu0
    %v704 = vadd.f32 %v97, %v703
    %v705 = vpop.f32.mrf.mxu0
    %v706 = vadd.f32 %v93, %v705
    %v707 = vpop.f32.mrf.mxu0
    %v708 = vadd.f32 %v97, %v707
    %709 = vmatprep.mubr.bf16.mxu0 0
    %710 = vmatmul.mubr.bf16.gmra.mxu0 %v393
    %v711 = vpop.f32.mrf.mxu0
    %v712 = vadd.f32 %v93, %v711
    %v713 = vpop.f32.mrf.mxu0
    %v714 = vadd.f32 %v97, %v713
    %v715 = vpop.f32.mrf.mxu0
    %v716 = vadd.f32 %v93, %v715
    %v717 = vpop.f32.mrf.mxu0
    %v718 = vadd.f32 %v97, %v717
    %719 = vmatprep.mubr.bf16.mxu0 0
    %720 = vmatmul.mubr.bf16.gmra.mxu0 %v396
    %v721 = vpop.f32.mrf.mxu0
    %v722 = vadd.f32 %v93, %v721
    %v723 = vpop.f32.mrf.mxu0
    %v724 = vadd.f32 %v97, %v723
    %v725 = vpop.f32.mrf.mxu0
    %v726 = vadd.f32 %v93, %v725
    %v727 = vpop.f32.mrf.mxu0
    %v728 = vadd.f32 %v97, %v727
    %729 = vmatprep.mubr.bf16.mxu0 0
    %730 = vmatmul.mubr.bf16.gmra.mxu0 %v399
    %v731 = vpop.f32.mrf.mxu0
    %v732 = vadd.f32 %v93, %v731
    %v733 = vpop.f32.mrf.mxu0
    %v734 = vadd.f32 %v97, %v733
    %v735 = vpop.f32.mrf.mxu0
    %v736 = vadd.f32 %v93, %v735
    %v737 = vpop.f32.mrf.mxu0
    %v738 = vadd.f32 %v97, %v737
    %739 = vmatprep.mubr.bf16.mxu0 0
    %740 = vmatmul.mubr.bf16.gmra.mxu0 %v402
    %v741 = vpop.f32.mrf.mxu0
    %v742 = vadd.f32 %v93, %v741
    %v743 = vpop.f32.mrf.mxu0
    %v744 = vadd.f32 %v97, %v743
    %v745 = vpop.f32.mrf.mxu0
    %v746 = vadd.f32 %v93, %v745
    %v747 = vpop.f32.mrf.mxu0
    %v748 = vadd.f32 %v97, %v747
    %749 = vmatprep.mubr.bf16.mxu0 0
    %750 = vmatmul.mubr.bf16.gmra.mxu0 %v405
    %v751 = vpop.f32.mrf.mxu0
    %v752 = vadd.f32 %v93, %v751
    %v753 = vpop.f32.mrf.mxu0
    %v754 = vadd.f32 %v97, %v753
    %v755 = vpop.f32.mrf.mxu0
    %v756 = vadd.f32 %v93, %v755
    %v757 = vpop.f32.mrf.mxu0
    %v758 = vadd.f32 %v97, %v757
    %759 = vdwg.mxu0
    %760 = vmatprep.subr.bf16.mxu0 0
    %761 = vmatpush1.bf16.msra.mxu0 0
    %762 = vmatprep.subr.bf16.mxu0 0
    %763 = vmatpush1.bf16.msra.mxu0 0
    %764 = vmatprep.subr.bf16.mxu0 0
    %765 = vmatpush1.bf16.msra.mxu0 0
    %766 = vmatprep.subr.bf16.mxu0 0
    %767 = vmatpush1.bf16.msra.mxu0 0
    %768 = vmatprep.subr.bf16.mxu0 0
    %769 = vmatpush1.bf16.msra.mxu0 0
    %770 = vmatprep.subr.bf16.mxu0 0
    %771 = vmatpush1.bf16.msra.mxu0 0
    %772 = vmatprep.subr.bf16.mxu0 %v301
    %773 = vmatpush1.bf16.msra.mxu0 %v300
    %774 = vmatprep.subr.bf16.mxu0 %v297
    %775 = vmatpush1.bf16.msra.mxu0 %v296
    %776 = vmatprep.subr.bf16.mxu0 0
    %777 = vmatpush2.bf16.msra.mxu0 0
    %778 = vmatprep.subr.bf16.mxu0 0
    %779 = vmatpush2.bf16.msra.mxu0 0
    %780 = vmatprep.subr.bf16.mxu0 0
    %781 = vmatpush2.bf16.msra.mxu0 0
    %782 = vmatprep.subr.bf16.mxu0 0
    %783 = vmatpush2.bf16.msra.mxu0 0
    %784 = vmatprep.subr.bf16.mxu0 0
    %785 = vmatpush2.bf16.msra.mxu0 0
    %786 = vmatprep.subr.bf16.mxu0 0
    %787 = vmatpush2.bf16.msra.mxu0 0
    %788 = vmatprep.subr.bf16.mxu0 0
    %789 = vmatpush2.bf16.msra.mxu0 0
    %790 = vmatprep.subr.bf16.mxu0 0
    %791 = vmatpush2.bf16.msra.mxu0 0
    %792 = vmatprep.mubr.bf16.mxu0 0
    %793 = vmatmul.mubr.bf16.gmra.mxu0 %v312
    %v794 = vpop.f32.mrf.mxu0
    %v795 = vadd.f32 %v101, %v794
    %v796 = vpop.f32.mrf.mxu0
    %v797 = vadd.f32 %v105, %v796
    %v798 = vpop.f32.mrf.mxu0
    %v799 = vadd.f32 %v101, %v798
    %v800 = vpop.f32.mrf.mxu0
    %v801 = vadd.f32 %v105, %v800
    %802 = vmatprep.mubr.bf16.mxu0 0
    %803 = vmatmul.mubr.bf16.gmra.mxu0 %v315
    %v804 = vpop.f32.mrf.mxu0
    %v805 = vadd.f32 %v101, %v804
    %v806 = vpop.f32.mrf.mxu0
    %v807 = vadd.f32 %v105, %v806
    %v808 = vpop.f32.mrf.mxu0
    %v809 = vadd.f32 %v101, %v808
    %v810 = vpop.f32.mrf.mxu0
    %v811 = vadd.f32 %v105, %v810
    %812 = vmatprep.mubr.bf16.mxu0 0
    %813 = vmatmul.mubr.bf16.gmra.mxu0 %v318
    %v814 = vpop.f32.mrf.mxu0
    %v815 = vadd.f32 %v101, %v814
    %v816 = vpop.f32.mrf.mxu0
    %v817 = vadd.f32 %v105, %v816
    %v818 = vpop.f32.mrf.mxu0
    %v819 = vadd.f32 %v101, %v818
    %v820 = vpop.f32.mrf.mxu0
    %v821 = vadd.f32 %v105, %v820
    %822 = vmatprep.mubr.bf16.mxu0 0
    %823 = vmatmul.mubr.bf16.gmra.mxu0 %v321
    %v824 = vpop.f32.mrf.mxu0
    %v825 = vadd.f32 %v101, %v824
    %v826 = vpop.f32.mrf.mxu0
    %v827 = vadd.f32 %v105, %v826
    %v828 = vpop.f32.mrf.mxu0
    %v829 = vadd.f32 %v101, %v828
    %v830 = vpop.f32.mrf.mxu0
    %v831 = vadd.f32 %v105, %v830
    %832 = vmatprep.mubr.bf16.mxu0 0
    %833 = vmatmul.mubr.bf16.gmra.mxu0 %v324
    %v834 = vpop.f32.mrf.mxu0
    %v835 = vadd.f32 %v101, %v834
    %v836 = vpop.f32.mrf.mxu0
    %v837 = vadd.f32 %v105, %v836
    %v838 = vpop.f32.mrf.mxu0
    %v839 = vadd.f32 %v101, %v838
    %v840 = vpop.f32.mrf.mxu0
    %v841 = vadd.f32 %v105, %v840
    %842 = vmatprep.mubr.bf16.mxu0 0
    %843 = vmatmul.mubr.bf16.gmra.mxu0 %v327
    %v844 = vpop.f32.mrf.mxu0
    %v845 = vadd.f32 %v101, %v844
    %v846 = vpop.f32.mrf.mxu0
    %v847 = vadd.f32 %v105, %v846
    %v848 = vpop.f32.mrf.mxu0
    %v849 = vadd.f32 %v101, %v848
    %v850 = vpop.f32.mrf.mxu0
    %v851 = vadd.f32 %v105, %v850
    %852 = vmatprep.mubr.bf16.mxu0 0
    %853 = vmatmul.mubr.bf16.gmra.mxu0 %v330
    %v854 = vpop.f32.mrf.mxu0
    %v855 = vadd.f32 %v101, %v854
    %v856 = vpop.f32.mrf.mxu0
    %v857 = vadd.f32 %v105, %v856
    %v858 = vpop.f32.mrf.mxu0
    %v859 = vadd.f32 %v101, %v858
    %v860 = vpop.f32.mrf.mxu0
    %v861 = vadd.f32 %v105, %v860
    %862 = vmatprep.mubr.bf16.mxu0 0
    %863 = vmatmul.mubr.bf16.gmra.mxu0 %v333
    %v864 = vpop.f32.mrf.mxu0
    %v865 = vadd.f32 %v101, %v864
    %v866 = vpop.f32.mrf.mxu0
    %v867 = vadd.f32 %v105, %v866
    %v868 = vpop.f32.mrf.mxu0
    %v869 = vadd.f32 %v101, %v868
    %v870 = vpop.f32.mrf.mxu0
    %v871 = vadd.f32 %v105, %v870
    %872 = vmatprep.mubr.bf16.mxu0 0
    %873 = vmatmul.mubr.bf16.gmra.mxu0 %v336
    %v874 = vpop.f32.mrf.mxu0
    %v875 = vadd.f32 %v101, %v874
    %v876 = vpop.f32.mrf.mxu0
    %v877 = vadd.f32 %v105, %v876
    %v878 = vpop.f32.mrf.mxu0
    %v879 = vadd.f32 %v101, %v878
    %v880 = vpop.f32.mrf.mxu0
    %v881 = vadd.f32 %v105, %v880
    %882 = vmatprep.mubr.bf16.mxu0 0
    %883 = vmatmul.mubr.bf16.gmra.mxu0 %v339
    %v884 = vpop.f32.mrf.mxu0
    %v885 = vadd.f32 %v101, %v884
    %v886 = vpop.f32.mrf.mxu0
    %v887 = vadd.f32 %v105, %v886
    %v888 = vpop.f32.mrf.mxu0
    %v889 = vadd.f32 %v101, %v888
    %v890 = vpop.f32.mrf.mxu0
    %v891 = vadd.f32 %v105, %v890
    %892 = vmatprep.mubr.bf16.mxu0 0
    %893 = vmatmul.mubr.bf16.gmra.mxu0 %v342
    %v894 = vpop.f32.mrf.mxu0
    %v895 = vadd.f32 %v101, %v894
    %v896 = vpop.f32.mrf.mxu0
    %v897 = vadd.f32 %v105, %v896
    %v898 = vpop.f32.mrf.mxu0
    %v899 = vadd.f32 %v101, %v898
    %v900 = vpop.f32.mrf.mxu0
    %v901 = vadd.f32 %v105, %v900
    %902 = vmatprep.mubr.bf16.mxu0 0
    %903 = vmatmul.mubr.bf16.gmra.mxu0 %v345
    %v904 = vpop.f32.mrf.mxu0
    %v905 = vadd.f32 %v101, %v904
    %v906 = vpop.f32.mrf.mxu0
    %v907 = vadd.f32 %v105, %v906
    %v908 = vpop.f32.mrf.mxu0
    %v909 = vadd.f32 %v101, %v908
    %v910 = vpop.f32.mrf.mxu0
    %v911 = vadd.f32 %v105, %v910
    %912 = vmatprep.mubr.bf16.mxu0 0
    %913 = vmatmul.mubr.bf16.gmra.mxu0 %v348
    %v914 = vpop.f32.mrf.mxu0
    %v915 = vadd.f32 %v101, %v914
    %v916 = vpop.f32.mrf.mxu0
    %v917 = vadd.f32 %v105, %v916
    %v918 = vpop.f32.mrf.mxu0
    %v919 = vadd.f32 %v101, %v918
    %v920 = vpop.f32.mrf.mxu0
    %v921 = vadd.f32 %v105, %v920
    %922 = vmatprep.mubr.bf16.mxu0 0
    %923 = vmatmul.mubr.bf16.gmra.mxu0 %v351
    %v924 = vpop.f32.mrf.mxu0
    %v925 = vadd.f32 %v101, %v924
    %v926 = vpop.f32.mrf.mxu0
    %v927 = vadd.f32 %v105, %v926
    %v928 = vpop.f32.mrf.mxu0
    %v929 = vadd.f32 %v101, %v928
    %v930 = vpop.f32.mrf.mxu0
    %v931 = vadd.f32 %v105, %v930
    %932 = vmatprep.mubr.bf16.mxu0 0
    %933 = vmatmul.mubr.bf16.gmra.mxu0 %v354
    %v934 = vpop.f32.mrf.mxu0
    %v935 = vadd.f32 %v101, %v934
    %v936 = vpop.f32.mrf.mxu0
    %v937 = vadd.f32 %v105, %v936
    %v938 = vpop.f32.mrf.mxu0
    %v939 = vadd.f32 %v101, %v938
    %v940 = vpop.f32.mrf.mxu0
    %v941 = vadd.f32 %v105, %v940
    %942 = vmatprep.mubr.bf16.mxu0 0
    %943 = vmatmul.mubr.bf16.gmra.mxu0 %v357
    %v944 = vpop.f32.mrf.mxu0
    %v945 = vadd.f32 %v101, %v944
    %v946 = vpop.f32.mrf.mxu0
    %v947 = vadd.f32 %v105, %v946
    %v948 = vpop.f32.mrf.mxu0
    %v949 = vadd.f32 %v101, %v948
    %v950 = vpop.f32.mrf.mxu0
    %v951 = vadd.f32 %v105, %v950
    %952 = vmatprep.mubr.bf16.mxu0 0
    %953 = vmatmul.mubr.bf16.gmra.mxu0 %v360
    %v954 = vpop.f32.mrf.mxu0
    %v955 = vadd.f32 %v101, %v954
    %v956 = vpop.f32.mrf.mxu0
    %v957 = vadd.f32 %v105, %v956
    %v958 = vpop.f32.mrf.mxu0
    %v959 = vadd.f32 %v101, %v958
    %v960 = vpop.f32.mrf.mxu0
    %v961 = vadd.f32 %v105, %v960
    %962 = vmatprep.mubr.bf16.mxu0 0
    %963 = vmatmul.mubr.bf16.gmra.mxu0 %v363
    %v964 = vpop.f32.mrf.mxu0
    %v965 = vadd.f32 %v101, %v964
    %v966 = vpop.f32.mrf.mxu0
    %v967 = vadd.f32 %v105, %v966
    %v968 = vpop.f32.mrf.mxu0
    %v969 = vadd.f32 %v101, %v968
    %v970 = vpop.f32.mrf.mxu0
    %v971 = vadd.f32 %v105, %v970
    %972 = vmatprep.mubr.bf16.mxu0 0
    %973 = vmatmul.mubr.bf16.gmra.mxu0 %v366
    %v974 = vpop.f32.mrf.mxu0
    %v975 = vadd.f32 %v101, %v974
    %v976 = vpop.f32.mrf.mxu0
    %v977 = vadd.f32 %v105, %v976
    %v978 = vpop.f32.mrf.mxu0
    %v979 = vadd.f32 %v101, %v978
    %v980 = vpop.f32.mrf.mxu0
    %v981 = vadd.f32 %v105, %v980
    %982 = vmatprep.mubr.bf16.mxu0 0
    %983 = vmatmul.mubr.bf16.gmra.mxu0 %v369
    %v984 = vpop.f32.mrf.mxu0
    %v985 = vadd.f32 %v101, %v984
    %v986 = vpop.f32.mrf.mxu0
    %v987 = vadd.f32 %v105, %v986
    %v988 = vpop.f32.mrf.mxu0
    %v989 = vadd.f32 %v101, %v988
    %v990 = vpop.f32.mrf.mxu0
    %v991 = vadd.f32 %v105, %v990
    %992 = vmatprep.mubr.bf16.mxu0 0
    %993 = vmatmul.mubr.bf16.gmra.mxu0 %v372
    %v994 = vpop.f32.mrf.mxu0
    %v995 = vadd.f32 %v101, %v994
    %v996 = vpop.f32.mrf.mxu0
    %v997 = vadd.f32 %v105, %v996
    %v998 = vpop.f32.mrf.mxu0
    %v999 = vadd.f32 %v101, %v998
    %v1000 = vpop.f32.mrf.mxu0
    %v1001 = vadd.f32 %v105, %v1000
    %1002 = vmatprep.mubr.bf16.mxu0 0
    %1003 = vmatmul.mubr.bf16.gmra.mxu0 %v375
    %v1004 = vpop.f32.mrf.mxu0
    %v1005 = vadd.f32 %v101, %v1004
    %v1006 = vpop.f32.mrf.mxu0
    %v1007 = vadd.f32 %v105, %v1006
    %v1008 = vpop.f32.mrf.mxu0
    %v1009 = vadd.f32 %v101, %v1008
    %v1010 = vpop.f32.mrf.mxu0
    %v1011 = vadd.f32 %v105, %v1010
    %1012 = vmatprep.mubr.bf16.mxu0 0
    %1013 = vmatmul.mubr.bf16.gmra.mxu0 %v378
    %v1014 = vpop.f32.mrf.mxu0
    %v1015 = vadd.f32 %v101, %v1014
    %v1016 = vpop.f32.mrf.mxu0
    %v1017 = vadd.f32 %v105, %v1016
    %v1018 = vpop.f32.mrf.mxu0
    %v1019 = vadd.f32 %v101, %v1018
    %v1020 = vpop.f32.mrf.mxu0
    %v1021 = vadd.f32 %v105, %v1020
    %1022 = vmatprep.mubr.bf16.mxu0 0
    %1023 = vmatmul.mubr.bf16.gmra.mxu0 %v381
    %v1024 = vpop.f32.mrf.mxu0
    %v1025 = vadd.f32 %v101, %v1024
    %v1026 = vpop.f32.mrf.mxu0
    %v1027 = vadd.f32 %v105, %v1026
    %v1028 = vpop.f32.mrf.mxu0
    %v1029 = vadd.f32 %v101, %v1028
    %v1030 = vpop.f32.mrf.mxu0
    %v1031 = vadd.f32 %v105, %v1030
    %1032 = vmatprep.mubr.bf16.mxu0 0
    %1033 = vmatmul.mubr.bf16.gmra.mxu0 %v384
    %v1034 = vpop.f32.mrf.mxu0
    %v1035 = vadd.f32 %v101, %v1034
    %v1036 = vpop.f32.mrf.mxu0
    %v1037 = vadd.f32 %v105, %v1036
    %v1038 = vpop.f32.mrf.mxu0
    %v1039 = vadd.f32 %v101, %v1038
    %v1040 = vpop.f32.mrf.mxu0
    %v1041 = vadd.f32 %v105, %v1040
    %1042 = vmatprep.mubr.bf16.mxu0 0
    %1043 = vmatmul.mubr.bf16.gmra.mxu0 %v387
    %v1044 = vpop.f32.mrf.mxu0
    %v1045 = vadd.f32 %v101, %v1044
    %v1046 = vpop.f32.mrf.mxu0
    %v1047 = vadd.f32 %v105, %v1046
    %v1048 = vpop.f32.mrf.mxu0
    %v1049 = vadd.f32 %v101, %v1048
    %v1050 = vpop.f32.mrf.mxu0
    %v1051 = vadd.f32 %v105, %v1050
    %1052 = vmatprep.mubr.bf16.mxu0 0
    %1053 = vmatmul.mubr.bf16.gmra.mxu0 %v390
    %v1054 = vpop.f32.mrf.mxu0
    %v1055 = vadd.f32 %v101, %v1054
    %v1056 = vpop.f32.mrf.mxu0
    %v1057 = vadd.f32 %v105, %v1056
    %v1058 = vpop.f32.mrf.mxu0
    %v1059 = vadd.f32 %v101, %v1058
    %v1060 = vpop.f32.mrf.mxu0
    %v1061 = vadd.f32 %v105, %v1060
    %1062 = vmatprep.mubr.bf16.mxu0 0
    %1063 = vmatmul.mubr.bf16.gmra.mxu0 %v393
    %v1064 = vpop.f32.mrf.mxu0
    %v1065 = vadd.f32 %v101, %v1064
    %v1066 = vpop.f32.mrf.mxu0
    %v1067 = vadd.f32 %v105, %v1066
    %v1068 = vpop.f32.mrf.mxu0
    %v1069 = vadd.f32 %v101, %v1068
    %v1070 = vpop.f32.mrf.mxu0
    %v1071 = vadd.f32 %v105, %v1070
    %1072 = vmatprep.mubr.bf16.mxu0 0
    %1073 = vmatmul.mubr.bf16.gmra.mxu0 %v396
    %v1074 = vpop.f32.mrf.mxu0
    %v1075 = vadd.f32 %v101, %v1074
    %v1076 = vpop.f32.mrf.mxu0
    %v1077 = vadd.f32 %v105, %v1076
    %v1078 = vpop.f32.mrf.mxu0
    %v1079 = vadd.f32 %v101, %v1078
    %v1080 = vpop.f32.mrf.mxu0
    %v1081 = vadd.f32 %v105, %v1080
    %1082 = vmatprep.mubr.bf16.mxu0 0
    %1083 = vmatmul.mubr.bf16.gmra.mxu0 %v399
    %v1084 = vpop.f32.mrf.mxu0
    %v1085 = vadd.f32 %v101, %v1084
    %v1086 = vpop.f32.mrf.mxu0
    %v1087 = vadd.f32 %v105, %v1086
    %v1088 = vpop.f32.mrf.mxu0
    %v1089 = vadd.f32 %v101, %v1088
    %v1090 = vpop.f32.mrf.mxu0
    %v1091 = vadd.f32 %v105, %v1090
    %1092 = vmatprep.mubr.bf16.mxu0 0
    %1093 = vmatmul.mubr.bf16.gmra.mxu0 %v402
    %v1094 = vpop.f32.mrf.mxu0
    %v1095 = vadd.f32 %v101, %v1094
    %v1096 = vpop.f32.mrf.mxu0
    %v1097 = vadd.f32 %v105, %v1096
    %v1098 = vpop.f32.mrf.mxu0
    %v1099 = vadd.f32 %v101, %v1098
    %v1100 = vpop.f32.mrf.mxu0
    %v1101 = vadd.f32 %v105, %v1100
    %1102 = vmatprep.mubr.bf16.mxu0 0
    %1103 = vmatmul.mubr.bf16.gmra.mxu0 %v405
    %v1104 = vpop.f32.mrf.mxu0
    %v1105 = vadd.f32 %v101, %v1104
    %v1106 = vpop.f32.mrf.mxu0
    %v1107 = vadd.f32 %v105, %v1106
    %v1108 = vpop.f32.mrf.mxu0
    %v1109 = vadd.f32 %v101, %v1108
    %v1110 = vpop.f32.mrf.mxu0
    %v1111 = vadd.f32 %v105, %v1110
    %1112 = vdwg.mxu0
    %v1113 = vpack.c.bf16 %v446, %v442
    %v1114 = vpack.c.bf16 %v448, %v444
    %v1115 = vpack.c.bf16 %v799, %v795
    %v1116 = vpack.c.bf16 %v801, %v797
    %v1117 = vpack.c.bf16 %v456, %v452
    %v1118 = vpack.c.bf16 %v458, %v454
    %v1119 = vpack.c.bf16 %v809, %v805
    %v1120 = vpack.c.bf16 %v811, %v807
    %v1121 = vpack.c.bf16 %v466, %v462
    %v1122 = vpack.c.bf16 %v468, %v464
    %v1123 = vpack.c.bf16 %v819, %v815
    %v1124 = vpack.c.bf16 %v821, %v817
    %v1125 = vpack.c.bf16 %v476, %v472
    %v1126 = vpack.c.bf16 %v478, %v474
    %v1127 = vpack.c.bf16 %v829, %v825
    %v1128 = vpack.c.bf16 %v831, %v827
    %v1129 = vpack.c.bf16 %v486, %v482
    %v1130 = vpack.c.bf16 %v488, %v484
    %v1131 = vpack.c.bf16 %v839, %v835
    %v1132 = vpack.c.bf16 %v841, %v837
    %v1133 = vpack.c.bf16 %v496, %v492
    %v1134 = vpack.c.bf16 %v498, %v494
    %v1135 = vpack.c.bf16 %v849, %v845
    %v1136 = vpack.c.bf16 %v851, %v847
    %v1137 = vpack.c.bf16 %v506, %v502
    %v1138 = vpack.c.bf16 %v508, %v504
    %v1139 = vpack.c.bf16 %v859, %v855
    %v1140 = vpack.c.bf16 %v861, %v857
    %v1141 = vpack.c.bf16 %v516, %v512
    %v1142 = vpack.c.bf16 %v518, %v514
    %v1143 = vpack.c.bf16 %v869, %v865
    %v1144 = vpack.c.bf16 %v871, %v867
    %v1145 = vpack.c.bf16 %v526, %v522
    %v1146 = vpack.c.bf16 %v528, %v524
    %v1147 = vpack.c.bf16 %v879, %v875
    %v1148 = vpack.c.bf16 %v881, %v877
    %v1149 = vpack.c.bf16 %v536, %v532
    %v1150 = vpack.c.bf16 %v538, %v534
    %v1151 = vpack.c.bf16 %v889, %v885
    %v1152 = vpack.c.bf16 %v891, %v887
    %v1153 = vpack.c.bf16 %v546, %v542
    %v1154 = vpack.c.bf16 %v548, %v544
    %v1155 = vpack.c.bf16 %v899, %v895
    %v1156 = vpack.c.bf16 %v901, %v897
    %v1157 = vpack.c.bf16 %v556, %v552
    %v1158 = vpack.c.bf16 %v558, %v554
    %v1159 = vpack.c.bf16 %v909, %v905
    %v1160 = vpack.c.bf16 %v911, %v907
    %v1161 = vpack.c.bf16 %v566, %v562
    %v1162 = vpack.c.bf16 %v568, %v564
    %v1163 = vpack.c.bf16 %v919, %v915
    %v1164 = vpack.c.bf16 %v921, %v917
    %v1165 = vpack.c.bf16 %v576, %v572
    %v1166 = vpack.c.bf16 %v578, %v574
    %v1167 = vpack.c.bf16 %v929, %v925
    %v1168 = vpack.c.bf16 %v931, %v927
    %v1169 = vpack.c.bf16 %v586, %v582
    %v1170 = vpack.c.bf16 %v588, %v584
    %v1171 = vpack.c.bf16 %v939, %v935
    %v1172 = vpack.c.bf16 %v941, %v937
    %v1173 = vpack.c.bf16 %v596, %v592
    %v1174 = vpack.c.bf16 %v598, %v594
    %v1175 = vpack.c.bf16 %v949, %v945
    %v1176 = vpack.c.bf16 %v951, %v947
    %v1177 = vpack.c.bf16 %v606, %v602
    %v1178 = vpack.c.bf16 %v608, %v604
    %v1179 = vpack.c.bf16 %v959, %v955
    %v1180 = vpack.c.bf16 %v961, %v957
    %v1181 = vpack.c.bf16 %v616, %v612
    %v1182 = vpack.c.bf16 %v618, %v614
    %v1183 = vpack.c.bf16 %v969, %v965
    %v1184 = vpack.c.bf16 %v971, %v967
    %v1185 = vpack.c.bf16 %v626, %v622
    %v1186 = vpack.c.bf16 %v628, %v624
    %v1187 = vpack.c.bf16 %v979, %v975
    %v1188 = vpack.c.bf16 %v981, %v977
    %v1189 = vpack.c.bf16 %v636, %v632
    %v1190 = vpack.c.bf16 %v638, %v634
    %v1191 = vpack.c.bf16 %v989, %v985
    %v1192 = vpack.c.bf16 %v991, %v987
    %v1193 = vpack.c.bf16 %v646, %v642
    %v1194 = vpack.c.bf16 %v648, %v644
    %v1195 = vpack.c.bf16 %v999, %v995
    %v1196 = vpack.c.bf16 %v1001, %v997
    %v1197 = vpack.c.bf16 %v656, %v652
    %v1198 = vpack.c.bf16 %v658, %v654
    %v1199 = vpack.c.bf16 %v1009, %v1005
    %v1200 = vpack.c.bf16 %v1011, %v1007
    %v1201 = vpack.c.bf16 %v666, %v662
    %v1202 = vpack.c.bf16 %v668, %v664
    %v1203 = vpack.c.bf16 %v1019, %v1015
    %v1204 = vpack.c.bf16 %v1021, %v1017
    %v1205 = vpack.c.bf16 %v676, %v672
    %v1206 = vpack.c.bf16 %v678, %v674
    %v1207 = vpack.c.bf16 %v1029, %v1025
    %v1208 = vpack.c.bf16 %v1031, %v1027
    %v1209 = vpack.c.bf16 %v686, %v682
    %v1210 = vpack.c.bf16 %v688, %v684
    %v1211 = vpack.c.bf16 %v1039, %v1035
    %v1212 = vpack.c.bf16 %v1041, %v1037
    %v1213 = vpack.c.bf16 %v696, %v692
    %v1214 = vpack.c.bf16 %v698, %v694
    %v1215 = vpack.c.bf16 %v1049, %v1045
    %v1216 = vpack.c.bf16 %v1051, %v1047
    %v1217 = vpack.c.bf16 %v706, %v702
    %v1218 = vpack.c.bf16 %v708, %v704
    %v1219 = vpack.c.bf16 %v1059, %v1055
    %v1220 = vpack.c.bf16 %v1061, %v1057
    %v1221 = vpack.c.bf16 %v716, %v712
    %v1222 = vpack.c.bf16 %v718, %v714
    %v1223 = vpack.c.bf16 %v1069, %v1065
    %v1224 = vpack.c.bf16 %v1071, %v1067
    %v1225 = vpack.c.bf16 %v726, %v722
    %v1226 = vpack.c.bf16 %v728, %v724
    %v1227 = vpack.c.bf16 %v1079, %v1075
    %v1228 = vpack.c.bf16 %v1081, %v1077
    %v1229 = vpack.c.bf16 %v736, %v732
    %v1230 = vpack.c.bf16 %v738, %v734
    %v1231 = vpack.c.bf16 %v1089, %v1085
    %v1232 = vpack.c.bf16 %v1091, %v1087
    %v1233 = vpack.c.bf16 %v746, %v742
    %v1234 = vpack.c.bf16 %v748, %v744
    %v1235 = vpack.c.bf16 %v1099, %v1095
    %v1236 = vpack.c.bf16 %v1101, %v1097
    %v1237 = vpack.c.bf16 %v756, %v752
    %v1238 = vpack.c.bf16 %v758, %v754
    %v1239 = vpack.c.bf16 %v1109, %v1105
    %v1240 = vpack.c.bf16 %v1111, %v1107
    %v1369 = vunpack.c.l.b16 %v1113
    %v1370 = vunpack.c.l.b16 %v1114
    %v1371 = vunpack.c.l.b16 %v1115
    %v1372 = vunpack.c.l.b16 %v1116
    %v1373 = vunpack.c.h.b16 %v1113
    %v1374 = vunpack.c.h.b16 %v1114
    %v1375 = vunpack.c.h.b16 %v1115
    %v1376 = vunpack.c.h.b16 %v1116
    %v1377 = vunpack.c.l.b16 %v1117
    %v1378 = vunpack.c.l.b16 %v1118
    %v1379 = vunpack.c.l.b16 %v1119
    %v1380 = vunpack.c.l.b16 %v1120
    %v1381 = vunpack.c.h.b16 %v1117
    %v1382 = vunpack.c.h.b16 %v1118
    %v1383 = vunpack.c.h.b16 %v1119
    %v1384 = vunpack.c.h.b16 %v1120
    %v1385 = vunpack.c.l.b16 %v1121
    %v1386 = vunpack.c.l.b16 %v1122
    %v1387 = vunpack.c.l.b16 %v1123
    %v1388 = vunpack.c.l.b16 %v1124
    %v1389 = vunpack.c.h.b16 %v1121
    %v1390 = vunpack.c.h.b16 %v1122
    %v1391 = vunpack.c.h.b16 %v1123
    %v1392 = vunpack.c.h.b16 %v1124
    %v1393 = vunpack.c.l.b16 %v1125
    %v1394 = vunpack.c.l.b16 %v1126
    %v1395 = vunpack.c.l.b16 %v1127
    %v1396 = vunpack.c.l.b16 %v1128
    %v1397 = vunpack.c.h.b16 %v1125
    %v1398 = vunpack.c.h.b16 %v1126
    %v1399 = vunpack.c.h.b16 %v1127
    %v1400 = vunpack.c.h.b16 %v1128
    %v1401 = vunpack.c.l.b16 %v1129
    %v1402 = vunpack.c.l.b16 %v1130
    %v1403 = vunpack.c.l.b16 %v1131
    %v1404 = vunpack.c.l.b16 %v1132
    %v1405 = vunpack.c.h.b16 %v1129
    %v1406 = vunpack.c.h.b16 %v1130
    %v1407 = vunpack.c.h.b16 %v1131
    %v1408 = vunpack.c.h.b16 %v1132
    %v1409 = vunpack.c.l.b16 %v1133
    %v1410 = vunpack.c.l.b16 %v1134
    %v1411 = vunpack.c.l.b16 %v1135
    %v1412 = vunpack.c.l.b16 %v1136
    %v1413 = vunpack.c.h.b16 %v1133
    %v1414 = vunpack.c.h.b16 %v1134
    %v1415 = vunpack.c.h.b16 %v1135
    %v1416 = vunpack.c.h.b16 %v1136
    %v1417 = vunpack.c.l.b16 %v1137
    %v1418 = vunpack.c.l.b16 %v1138
    %v1419 = vunpack.c.l.b16 %v1139
    %v1420 = vunpack.c.l.b16 %v1140
    %v1421 = vunpack.c.h.b16 %v1137
    %v1422 = vunpack.c.h.b16 %v1138
    %v1423 = vunpack.c.h.b16 %v1139
    %v1424 = vunpack.c.h.b16 %v1140
    %v1425 = vunpack.c.l.b16 %v1141
    %v1426 = vunpack.c.l.b16 %v1142
    %v1427 = vunpack.c.l.b16 %v1143
    %v1428 = vunpack.c.l.b16 %v1144
    %v1429 = vunpack.c.h.b16 %v1141
    %v1430 = vunpack.c.h.b16 %v1142
    %v1431 = vunpack.c.h.b16 %v1143
    %v1432 = vunpack.c.h.b16 %v1144
    %v1433 = vunpack.c.l.b16 %v1145
    %v1434 = vunpack.c.l.b16 %v1146
    %v1435 = vunpack.c.l.b16 %v1147
    %v1436 = vunpack.c.l.b16 %v1148
    %v1437 = vunpack.c.h.b16 %v1145
    %v1438 = vunpack.c.h.b16 %v1146
    %v1439 = vunpack.c.h.b16 %v1147
    %v1440 = vunpack.c.h.b16 %v1148
    %v1441 = vunpack.c.l.b16 %v1149
    %v1442 = vunpack.c.l.b16 %v1150
    %v1443 = vunpack.c.l.b16 %v1151
    %v1444 = vunpack.c.l.b16 %v1152
    %v1445 = vunpack.c.h.b16 %v1149
    %v1446 = vunpack.c.h.b16 %v1150
    %v1447 = vunpack.c.h.b16 %v1151
    %v1448 = vunpack.c.h.b16 %v1152
    %v1449 = vunpack.c.l.b16 %v1153
    %v1450 = vunpack.c.l.b16 %v1154
    %v1451 = vunpack.c.l.b16 %v1155
    %v1452 = vunpack.c.l.b16 %v1156
    %v1453 = vunpack.c.h.b16 %v1153
    %v1454 = vunpack.c.h.b16 %v1154
    %v1455 = vunpack.c.h.b16 %v1155
    %v1456 = vunpack.c.h.b16 %v1156
    %v1457 = vunpack.c.l.b16 %v1157
    %v1458 = vunpack.c.l.b16 %v1158
    %v1459 = vunpack.c.l.b16 %v1159
    %v1460 = vunpack.c.l.b16 %v1160
    %v1461 = vunpack.c.h.b16 %v1157
    %v1462 = vunpack.c.h.b16 %v1158
    %v1463 = vunpack.c.h.b16 %v1159
    %v1464 = vunpack.c.h.b16 %v1160
    %v1465 = vunpack.c.l.b16 %v1161
    %v1466 = vunpack.c.l.b16 %v1162
    %v1467 = vunpack.c.l.b16 %v1163
    %v1468 = vunpack.c.l.b16 %v1164
    %v1469 = vunpack.c.h.b16 %v1161
    %v1470 = vunpack.c.h.b16 %v1162
    %v1471 = vunpack.c.h.b16 %v1163
    %v1472 = vunpack.c.h.b16 %v1164
    %v1473 = vunpack.c.l.b16 %v1165
    %v1474 = vunpack.c.l.b16 %v1166
    %v1475 = vunpack.c.l.b16 %v1167
    %v1476 = vunpack.c.l.b16 %v1168
    %v1477 = vunpack.c.h.b16 %v1165
    %v1478 = vunpack.c.h.b16 %v1166
    %v1479 = vunpack.c.h.b16 %v1167
    %v1480 = vunpack.c.h.b16 %v1168
    %v1481 = vunpack.c.l.b16 %v1169
    %v1482 = vunpack.c.l.b16 %v1170
    %v1483 = vunpack.c.l.b16 %v1171
    %v1484 = vunpack.c.l.b16 %v1172
    %v1485 = vunpack.c.h.b16 %v1169
    %v1486 = vunpack.c.h.b16 %v1170
    %v1487 = vunpack.c.h.b16 %v1171
    %v1488 = vunpack.c.h.b16 %v1172
    %v1489 = vunpack.c.l.b16 %v1173
    %v1490 = vunpack.c.l.b16 %v1174
    %v1491 = vunpack.c.l.b16 %v1175
    %v1492 = vunpack.c.l.b16 %v1176
    %v1493 = vunpack.c.h.b16 %v1173
    %v1494 = vunpack.c.h.b16 %v1174
    %v1495 = vunpack.c.h.b16 %v1175
    %v1496 = vunpack.c.h.b16 %v1176
    %v1497 = vunpack.c.l.b16 %v1177
    %v1498 = vunpack.c.l.b16 %v1178
    %v1499 = vunpack.c.l.b16 %v1179
    %v1500 = vunpack.c.l.b16 %v1180
    %v1501 = vunpack.c.h.b16 %v1177
    %v1502 = vunpack.c.h.b16 %v1178
    %v1503 = vunpack.c.h.b16 %v1179
    %v1504 = vunpack.c.h.b16 %v1180
    %v1505 = vunpack.c.l.b16 %v1181
    %v1506 = vunpack.c.l.b16 %v1182
    %v1507 = vunpack.c.l.b16 %v1183
    %v1508 = vunpack.c.l.b16 %v1184
    %v1509 = vunpack.c.h.b16 %v1181
    %v1510 = vunpack.c.h.b16 %v1182
    %v1511 = vunpack.c.h.b16 %v1183
    %v1512 = vunpack.c.h.b16 %v1184
    %v1513 = vunpack.c.l.b16 %v1185
    %v1514 = vunpack.c.l.b16 %v1186
    %v1515 = vunpack.c.l.b16 %v1187
    %v1516 = vunpack.c.l.b16 %v1188
    %v1517 = vunpack.c.h.b16 %v1185
    %v1518 = vunpack.c.h.b16 %v1186
    %v1519 = vunpack.c.h.b16 %v1187
    %v1520 = vunpack.c.h.b16 %v1188
    %v1521 = vunpack.c.l.b16 %v1189
    %v1522 = vunpack.c.l.b16 %v1190
    %v1523 = vunpack.c.l.b16 %v1191
    %v1524 = vunpack.c.l.b16 %v1192
    %v1525 = vunpack.c.h.b16 %v1189
    %v1526 = vunpack.c.h.b16 %v1190
    %v1527 = vunpack.c.h.b16 %v1191
    %v1528 = vunpack.c.h.b16 %v1192
    %v1529 = vunpack.c.l.b16 %v1193
    %v1530 = vunpack.c.l.b16 %v1194
    %v1531 = vunpack.c.l.b16 %v1195
    %v1532 = vunpack.c.l.b16 %v1196
    %v1533 = vunpack.c.h.b16 %v1193
    %v1534 = vunpack.c.h.b16 %v1194
    %v1535 = vunpack.c.h.b16 %v1195
    %v1536 = vunpack.c.h.b16 %v1196
    %v1537 = vunpack.c.l.b16 %v1197
    %v1538 = vunpack.c.l.b16 %v1198
    %v1539 = vunpack.c.l.b16 %v1199
    %v1540 = vunpack.c.l.b16 %v1200
    %v1541 = vunpack.c.h.b16 %v1197
    %v1542 = vunpack.c.h.b16 %v1198
    %v1543 = vunpack.c.h.b16 %v1199
    %v1544 = vunpack.c.h.b16 %v1200
    %v1545 = vunpack.c.l.b16 %v1201
    %v1546 = vunpack.c.l.b16 %v1202
    %v1547 = vunpack.c.l.b16 %v1203
    %v1548 = vunpack.c.l.b16 %v1204
    %v1549 = vunpack.c.h.b16 %v1201
    %v1550 = vunpack.c.h.b16 %v1202
    %v1551 = vunpack.c.h.b16 %v1203
    %v1552 = vunpack.c.h.b16 %v1204
    %v1553 = vunpack.c.l.b16 %v1205
    %v1554 = vunpack.c.l.b16 %v1206
    %v1555 = vunpack.c.l.b16 %v1207
    %v1556 = vunpack.c.l.b16 %v1208
    %v1557 = vunpack.c.h.b16 %v1205
    %v1558 = vunpack.c.h.b16 %v1206
    %v1559 = vunpack.c.h.b16 %v1207
    %v1560 = vunpack.c.h.b16 %v1208
    %v1561 = vunpack.c.l.b16 %v1209
    %v1562 = vunpack.c.l.b16 %v1210
    %v1563 = vunpack.c.l.b16 %v1211
    %v1564 = vunpack.c.l.b16 %v1212
    %v1565 = vunpack.c.h.b16 %v1209
    %v1566 = vunpack.c.h.b16 %v1210
    %v1567 = vunpack.c.h.b16 %v1211
    %v1568 = vunpack.c.h.b16 %v1212
    %v1569 = vunpack.c.l.b16 %v1213
    %v1570 = vunpack.c.l.b16 %v1214
    %v1571 = vunpack.c.l.b16 %v1215
    %v1572 = vunpack.c.l.b16 %v1216
    %v1573 = vunpack.c.h.b16 %v1213
    %v1574 = vunpack.c.h.b16 %v1214
    %v1575 = vunpack.c.h.b16 %v1215
    %v1576 = vunpack.c.h.b16 %v1216
    %v1577 = vunpack.c.l.b16 %v1217
    %v1578 = vunpack.c.l.b16 %v1218
    %v1579 = vunpack.c.l.b16 %v1219
    %v1580 = vunpack.c.l.b16 %v1220
    %v1581 = vunpack.c.h.b16 %v1217
    %v1582 = vunpack.c.h.b16 %v1218
    %v1583 = vunpack.c.h.b16 %v1219
    %v1584 = vunpack.c.h.b16 %v1220
    %v1585 = vunpack.c.l.b16 %v1221
    %v1586 = vunpack.c.l.b16 %v1222
    %v1587 = vunpack.c.l.b16 %v1223
    %v1588 = vunpack.c.l.b16 %v1224
    %v1589 = vunpack.c.h.b16 %v1221
    %v1590 = vunpack.c.h.b16 %v1222
    %v1591 = vunpack.c.h.b16 %v1223
    %v1592 = vunpack.c.h.b16 %v1224
    %v1593 = vunpack.c.l.b16 %v1225
    %v1594 = vunpack.c.l.b16 %v1226
    %v1595 = vunpack.c.l.b16 %v1227
    %v1596 = vunpack.c.l.b16 %v1228
    %v1597 = vunpack.c.h.b16 %v1225
    %v1598 = vunpack.c.h.b16 %v1226
    %v1599 = vunpack.c.h.b16 %v1227
    %v1600 = vunpack.c.h.b16 %v1228
    %v1601 = vunpack.c.l.b16 %v1229
    %v1602 = vunpack.c.l.b16 %v1230
    %v1603 = vunpack.c.l.b16 %v1231
    %v1604 = vunpack.c.l.b16 %v1232
    %v1605 = vunpack.c.h.b16 %v1229
    %v1606 = vunpack.c.h.b16 %v1230
    %v1607 = vunpack.c.h.b16 %v1231
    %v1608 = vunpack.c.h.b16 %v1232
    %v1609 = vunpack.c.l.b16 %v1233
    %v1610 = vunpack.c.l.b16 %v1234
    %v1611 = vunpack.c.l.b16 %v1235
    %v1612 = vunpack.c.l.b16 %v1236
    %v1613 = vunpack.c.h.b16 %v1233
    %v1614 = vunpack.c.h.b16 %v1234
    %v1615 = vunpack.c.h.b16 %v1235
    %v1616 = vunpack.c.h.b16 %v1236
    %v1617 = vunpack.c.l.b16 %v1237
    %v1618 = vunpack.c.l.b16 %v1238
    %v1619 = vunpack.c.l.b16 %v1239
    %v1620 = vunpack.c.l.b16 %v1240
    %v1621 = vunpack.c.h.b16 %v1237
    %v1622 = vunpack.c.h.b16 %v1238
    %v1623 = vunpack.c.h.b16 %v1239
    %v1624 = vunpack.c.h.b16 %v1240
    %v1625 = vpack.c.b16 %v1370, %v1369
    %v1626 = vpack.c.b16 %v1372, %v1371
    %v1627 = vpack.c.b16 %v1374, %v1373
    %v1628 = vpack.c.b16 %v1376, %v1375
    %v1629 = vpack.c.b16 %v1378, %v1377
    %v1630 = vpack.c.b16 %v1380, %v1379
    %v1631 = vpack.c.b16 %v1382, %v1381
    %v1632 = vpack.c.b16 %v1384, %v1383
    %v1633 = vpack.c.b16 %v1386, %v1385
    %v1634 = vpack.c.b16 %v1388, %v1387
    %v1635 = vpack.c.b16 %v1390, %v1389
    %v1636 = vpack.c.b16 %v1392, %v1391
    %v1637 = vpack.c.b16 %v1394, %v1393
    %v1638 = vpack.c.b16 %v1396, %v1395
    %v1639 = vpack.c.b16 %v1398, %v1397
    %v1640 = vpack.c.b16 %v1400, %v1399
    %v1641 = vpack.c.b16 %v1402, %v1401
    %v1642 = vpack.c.b16 %v1404, %v1403
    %v1643 = vpack.c.b16 %v1406, %v1405
    %v1644 = vpack.c.b16 %v1408, %v1407
    %v1645 = vpack.c.b16 %v1410, %v1409
    %v1646 = vpack.c.b16 %v1412, %v1411
    %v1647 = vpack.c.b16 %v1414, %v1413
    %v1648 = vpack.c.b16 %v1416, %v1415
    %v1649 = vpack.c.b16 %v1418, %v1417
    %v1650 = vpack.c.b16 %v1420, %v1419
    %v1651 = vpack.c.b16 %v1422, %v1421
    %v1652 = vpack.c.b16 %v1424, %v1423
    %v1653 = vpack.c.b16 %v1426, %v1425
    %v1654 = vpack.c.b16 %v1428, %v1427
    %v1655 = vpack.c.b16 %v1430, %v1429
    %v1656 = vpack.c.b16 %v1432, %v1431
    %v1657 = vpack.c.b16 %v1434, %v1433
    %v1658 = vpack.c.b16 %v1436, %v1435
    %v1659 = vpack.c.b16 %v1438, %v1437
    %v1660 = vpack.c.b16 %v1440, %v1439
    %v1661 = vpack.c.b16 %v1442, %v1441
    %v1662 = vpack.c.b16 %v1444, %v1443
    %v1663 = vpack.c.b16 %v1446, %v1445
    %v1664 = vpack.c.b16 %v1448, %v1447
    %v1665 = vpack.c.b16 %v1450, %v1449
    %v1666 = vpack.c.b16 %v1452, %v1451
    %v1667 = vpack.c.b16 %v1454, %v1453
    %v1668 = vpack.c.b16 %v1456, %v1455
    %v1669 = vpack.c.b16 %v1458, %v1457
    %v1670 = vpack.c.b16 %v1460, %v1459
    %v1671 = vpack.c.b16 %v1462, %v1461
    %v1672 = vpack.c.b16 %v1464, %v1463
    %v1673 = vpack.c.b16 %v1466, %v1465
    %v1674 = vpack.c.b16 %v1468, %v1467
    %v1675 = vpack.c.b16 %v1470, %v1469
    %v1676 = vpack.c.b16 %v1472, %v1471
    %v1677 = vpack.c.b16 %v1474, %v1473
    %v1678 = vpack.c.b16 %v1476, %v1475
    %v1679 = vpack.c.b16 %v1478, %v1477
    %v1680 = vpack.c.b16 %v1480, %v1479
    %v1681 = vpack.c.b16 %v1482, %v1481
    %v1682 = vpack.c.b16 %v1484, %v1483
    %v1683 = vpack.c.b16 %v1486, %v1485
    %v1684 = vpack.c.b16 %v1488, %v1487
    %v1685 = vpack.c.b16 %v1490, %v1489
    %v1686 = vpack.c.b16 %v1492, %v1491
    %v1687 = vpack.c.b16 %v1494, %v1493
    %v1688 = vpack.c.b16 %v1496, %v1495
    %v1689 = vpack.c.b16 %v1498, %v1497
    %v1690 = vpack.c.b16 %v1500, %v1499
    %v1691 = vpack.c.b16 %v1502, %v1501
    %v1692 = vpack.c.b16 %v1504, %v1503
    %v1693 = vpack.c.b16 %v1506, %v1505
    %v1694 = vpack.c.b16 %v1508, %v1507
    %v1695 = vpack.c.b16 %v1510, %v1509
    %v1696 = vpack.c.b16 %v1512, %v1511
    %v1697 = vpack.c.b16 %v1514, %v1513
    %v1698 = vpack.c.b16 %v1516, %v1515
    %v1699 = vpack.c.b16 %v1518, %v1517
    %v1700 = vpack.c.b16 %v1520, %v1519
    %v1701 = vpack.c.b16 %v1522, %v1521
    %v1702 = vpack.c.b16 %v1524, %v1523
    %v1703 = vpack.c.b16 %v1526, %v1525
    %v1704 = vpack.c.b16 %v1528, %v1527
    %v1705 = vpack.c.b16 %v1530, %v1529
    %v1706 = vpack.c.b16 %v1532, %v1531
    %v1707 = vpack.c.b16 %v1534, %v1533
    %v1708 = vpack.c.b16 %v1536, %v1535
    %v1709 = vpack.c.b16 %v1538, %v1537
    %v1710 = vpack.c.b16 %v1540, %v1539
    %v1711 = vpack.c.b16 %v1542, %v1541
    %v1712 = vpack.c.b16 %v1544, %v1543
    %v1713 = vpack.c.b16 %v1546, %v1545
    %v1714 = vpack.c.b16 %v1548, %v1547
    %v1715 = vpack.c.b16 %v1550, %v1549
    %v1716 = vpack.c.b16 %v1552, %v1551
    %v1717 = vpack.c.b16 %v1554, %v1553
    %v1718 = vpack.c.b16 %v1556, %v1555
    %v1719 = vpack.c.b16 %v1558, %v1557
    %v1720 = vpack.c.b16 %v1560, %v1559
    %v1721 = vpack.c.b16 %v1562, %v1561
    %v1722 = vpack.c.b16 %v1564, %v1563
    %v1723 = vpack.c.b16 %v1566, %v1565
    %v1724 = vpack.c.b16 %v1568, %v1567
    %v1725 = vpack.c.b16 %v1570, %v1569
    %v1726 = vpack.c.b16 %v1572, %v1571
    %v1727 = vpack.c.b16 %v1574, %v1573
    %v1728 = vpack.c.b16 %v1576, %v1575
    %v1729 = vpack.c.b16 %v1578, %v1577
    %v1730 = vpack.c.b16 %v1580, %v1579
    %v1731 = vpack.c.b16 %v1582, %v1581
    %v1732 = vpack.c.b16 %v1584, %v1583
    %v1733 = vpack.c.b16 %v1586, %v1585
    %v1734 = vpack.c.b16 %v1588, %v1587
    %v1735 = vpack.c.b16 %v1590, %v1589
    %v1736 = vpack.c.b16 %v1592, %v1591
    %v1737 = vpack.c.b16 %v1594, %v1593
    %v1738 = vpack.c.b16 %v1596, %v1595
    %v1739 = vpack.c.b16 %v1598, %v1597
    %v1740 = vpack.c.b16 %v1600, %v1599
    %v1741 = vpack.c.b16 %v1602, %v1601
    %v1742 = vpack.c.b16 %v1604, %v1603
    %v1743 = vpack.c.b16 %v1606, %v1605
    %v1744 = vpack.c.b16 %v1608, %v1607
    %v1745 = vpack.c.b16 %v1610, %v1609
    %v1746 = vpack.c.b16 %v1612, %v1611
    %v1747 = vpack.c.b16 %v1614, %v1613
    %v1748 = vpack.c.b16 %v1616, %v1615
    %v1749 = vpack.c.b16 %v1618, %v1617
    %v1750 = vpack.c.b16 %v1620, %v1619
    %v1751 = vpack.c.b16 %v1622, %v1621
    %v1752 = vpack.c.b16 %v1624, %v1623
    %1881 = vst [vmem:[#allocation2] sm:$0xff] %v1625
    %1882 = vst [vmem:[#allocation2 + $0x8] sm:$0xff] %v1626
    %1883 = vst [vmem:[#allocation2 + $0x10] sm:$0xff] %v1627
    %1884 = vst [vmem:[#allocation2 + $0x18] sm:$0xff] %v1628
    %1885 = vst [vmem:[#allocation2 + $0x20] sm:$0xff] %v1629
    %1886 = vst [vmem:[#allocation2 + $0x28] sm:$0xff] %v1630
    %1887 = vst [vmem:[#allocation2 + $0x30] sm:$0xff] %v1631
    %1888 = vst [vmem:[#allocation2 + $0x38] sm:$0xff] %v1632
    %1889 = vst [vmem:[#allocation2 + $0x40] sm:$0xff] %v1633
    %1890 = vst [vmem:[#allocation2 + $0x48] sm:$0xff] %v1634
    %1891 = vst [vmem:[#allocation2 + $0x50] sm:$0xff] %v1635
    %1892 = vst [vmem:[#allocation2 + $0x58] sm:$0xff] %v1636
    %1893 = vst [vmem:[#allocation2 + $0x60] sm:$0xff] %v1637
    %1894 = vst [vmem:[#allocation2 + $0x68] sm:$0xff] %v1638
    %1895 = vst [vmem:[#allocation2 + $0x70] sm:$0xff] %v1639
    %1896 = vst [vmem:[#allocation2 + $0x78] sm:$0xff] %v1640
    %1897 = vst [vmem:[#allocation2 + $0x80] sm:$0xff] %v1641
    %1898 = vst [vmem:[#allocation2 + $0x88] sm:$0xff] %v1642
    %1899 = vst [vmem:[#allocation2 + $0x90] sm:$0xff] %v1643
    %1900 = vst [vmem:[#allocation2 + $0x98] sm:$0xff] %v1644
    %1901 = vst [vmem:[#allocation2 + $0xa0] sm:$0xff] %v1645
    %1902 = vst [vmem:[#allocation2 + $0xa8] sm:$0xff] %v1646
    %1903 = vst [vmem:[#allocation2 + $0xb0] sm:$0xff] %v1647
    %1904 = vst [vmem:[#allocation2 + $0xb8] sm:$0xff] %v1648
    %1905 = vst [vmem:[#allocation2 + $0xc0] sm:$0xff] %v1649
    %1906 = vst [vmem:[#allocation2 + $0xc8] sm:$0xff] %v1650
    %1907 = vst [vmem:[#allocation2 + $0xd0] sm:$0xff] %v1651
    %1908 = vst [vmem:[#allocation2 + $0xd8] sm:$0xff] %v1652
    %1909 = vst [vmem:[#allocation2 + $0xe0] sm:$0xff] %v1653
    %1910 = vst [vmem:[#allocation2 + $0xe8] sm:$0xff] %v1654
    %1911 = vst [vmem:[#allocation2 + $0xf0] sm:$0xff] %v1655
    %1912 = vst [vmem:[#allocation2 + $0xf8] sm:$0xff] %v1656
    %1913 = vst [vmem:[#allocation2 + $0x100] sm:$0xff] %v1657
    %1914 = vst [vmem:[#allocation2 + $0x108] sm:$0xff] %v1658
    %1915 = vst [vmem:[#allocation2 + $0x110] sm:$0xff] %v1659
    %1916 = vst [vmem:[#allocation2 + $0x118] sm:$0xff] %v1660
    %1917 = vst [vmem:[#allocation2 + $0x120] sm:$0xff] %v1661
    %1918 = vst [vmem:[#allocation2 + $0x128] sm:$0xff] %v1662
    %1919 = vst [vmem:[#allocation2 + $0x130] sm:$0xff] %v1663
    %1920 = vst [vmem:[#allocation2 + $0x138] sm:$0xff] %v1664
    %1921 = vst [vmem:[#allocation2 + $0x140] sm:$0xff] %v1665
    %1922 = vst [vmem:[#allocation2 + $0x148] sm:$0xff] %v1666
    %1923 = vst [vmem:[#allocation2 + $0x150] sm:$0xff] %v1667
    %1924 = vst [vmem:[#allocation2 + $0x158] sm:$0xff] %v1668
    %1925 = vst [vmem:[#allocation2 + $0x160] sm:$0xff] %v1669
    %1926 = vst [vmem:[#allocation2 + $0x168] sm:$0xff] %v1670
    %1927 = vst [vmem:[#allocation2 + $0x170] sm:$0xff] %v1671
    %1928 = vst [vmem:[#allocation2 + $0x178] sm:$0xff] %v1672
    %1929 = vst [vmem:[#allocation2 + $0x180] sm:$0xff] %v1673
    %1930 = vst [vmem:[#allocation2 + $0x188] sm:$0xff] %v1674
    %1931 = vst [vmem:[#allocation2 + $0x190] sm:$0xff] %v1675
    %1932 = vst [vmem:[#allocation2 + $0x198] sm:$0xff] %v1676
    %1933 = vst [vmem:[#allocation2 + $0x1a0] sm:$0xff] %v1677
    %1934 = vst [vmem:[#allocation2 + $0x1a8] sm:$0xff] %v1678
    %1935 = vst [vmem:[#allocation2 + $0x1b0] sm:$0xff] %v1679
    %1936 = vst [vmem:[#allocation2 + $0x1b8] sm:$0xff] %v1680
    %1937 = vst [vmem:[#allocation2 + $0x1c0] sm:$0xff] %v1681
    %1938 = vst [vmem:[#allocation2 + $0x1c8] sm:$0xff] %v1682
    %1939 = vst [vmem:[#allocation2 + $0x1d0] sm:$0xff] %v1683
    %1940 = vst [vmem:[#allocation2 + $0x1d8] sm:$0xff] %v1684
    %1941 = vst [vmem:[#allocation2 + $0x1e0] sm:$0xff] %v1685
    %1942 = vst [vmem:[#allocation2 + $0x1e8] sm:$0xff] %v1686
    %1943 = vst [vmem:[#allocation2 + $0x1f0] sm:$0xff] %v1687
    %1944 = vst [vmem:[#allocation2 + $0x1f8] sm:$0xff] %v1688
    %1945 = vst [vmem:[#allocation2 + $0x200] sm:$0xff] %v1689
    %1946 = vst [vmem:[#allocation2 + $0x208] sm:$0xff] %v1690
    %1947 = vst [vmem:[#allocation2 + $0x210] sm:$0xff] %v1691
    %1948 = vst [vmem:[#allocation2 + $0x218] sm:$0xff] %v1692
    %1949 = vst [vmem:[#allocation2 + $0x220] sm:$0xff] %v1693
    %1950 = vst [vmem:[#allocation2 + $0x228] sm:$0xff] %v1694
    %1951 = vst [vmem:[#allocation2 + $0x230] sm:$0xff] %v1695
    %1952 = vst [vmem:[#allocation2 + $0x238] sm:$0xff] %v1696
    %1953 = vst [vmem:[#allocation2 + $0x240] sm:$0xff] %v1697
    %1954 = vst [vmem:[#allocation2 + $0x248] sm:$0xff] %v1698
    %1955 = vst [vmem:[#allocation2 + $0x250] sm:$0xff] %v1699
    %1956 = vst [vmem:[#allocation2 + $0x258] sm:$0xff] %v1700
    %1957 = vst [vmem:[#allocation2 + $0x260] sm:$0xff] %v1701
    %1958 = vst [vmem:[#allocation2 + $0x268] sm:$0xff] %v1702
    %1959 = vst [vmem:[#allocation2 + $0x270] sm:$0xff] %v1703
    %1960 = vst [vmem:[#allocation2 + $0x278] sm:$0xff] %v1704
    %1961 = vst [vmem:[#allocation2 + $0x280] sm:$0xff] %v1705
    %1962 = vst [vmem:[#allocation2 + $0x288] sm:$0xff] %v1706
    %1963 = vst [vmem:[#allocation2 + $0x290] sm:$0xff] %v1707
    %1964 = vst [vmem:[#allocation2 + $0x298] sm:$0xff] %v1708
    %1965 = vst [vmem:[#allocation2 + $0x2a0] sm:$0xff] %v1709
    %1966 = vst [vmem:[#allocation2 + $0x2a8] sm:$0xff] %v1710
    %1967 = vst [vmem:[#allocation2 + $0x2b0] sm:$0xff] %v1711
    %1968 = vst [vmem:[#allocation2 + $0x2b8] sm:$0xff] %v1712
    %1969 = vst [vmem:[#allocation2 + $0x2c0] sm:$0xff] %v1713
    %1970 = vst [vmem:[#allocation2 + $0x2c8] sm:$0xff] %v1714
    %1971 = vst [vmem:[#allocation2 + $0x2d0] sm:$0xff] %v1715
    %1972 = vst [vmem:[#allocation2 + $0x2d8] sm:$0xff] %v1716
    %1973 = vst [vmem:[#allocation2 + $0x2e0] sm:$0xff] %v1717
    %1974 = vst [vmem:[#allocation2 + $0x2e8] sm:$0xff] %v1718
    %1975 = vst [vmem:[#allocation2 + $0x2f0] sm:$0xff] %v1719
    %1976 = vst [vmem:[#allocation2 + $0x2f8] sm:$0xff] %v1720
    %1977 = vst [vmem:[#allocation2 + $0x300] sm:$0xff] %v1721
    %1978 = vst [vmem:[#allocation2 + $0x308] sm:$0xff] %v1722
    %1979 = vst [vmem:[#allocation2 + $0x310] sm:$0xff] %v1723
    %1980 = vst [vmem:[#allocation2 + $0x318] sm:$0xff] %v1724
    %1981 = vst [vmem:[#allocation2 + $0x320] sm:$0xff] %v1725
    %1982 = vst [vmem:[#allocation2 + $0x328] sm:$0xff] %v1726
    %1983 = vst [vmem:[#allocation2 + $0x330] sm:$0xff] %v1727
    %1984 = vst [vmem:[#allocation2 + $0x338] sm:$0xff] %v1728
    %1985 = vst [vmem:[#allocation2 + $0x340] sm:$0xff] %v1729
    %1986 = vst [vmem:[#allocation2 + $0x348] sm:$0xff] %v1730
    %1987 = vst [vmem:[#allocation2 + $0x350] sm:$0xff] %v1731
    %1988 = vst [vmem:[#allocation2 + $0x358] sm:$0xff] %v1732
    %1989 = vst [vmem:[#allocation2 + $0x360] sm:$0xff] %v1733
    %1990 = vst [vmem:[#allocation2 + $0x368] sm:$0xff] %v1734
    %1991 = vst [vmem:[#allocation2 + $0x370] sm:$0xff] %v1735
    %1992 = vst [vmem:[#allocation2 + $0x378] sm:$0xff] %v1736
    %1993 = vst [vmem:[#allocation2 + $0x380] sm:$0xff] %v1737
    %1994 = vst [vmem:[#allocation2 + $0x388] sm:$0xff] %v1738
    %1995 = vst [vmem:[#allocation2 + $0x390] sm:$0xff] %v1739
    %1996 = vst [vmem:[#allocation2 + $0x398] sm:$0xff] %v1740
    %1997 = vst [vmem:[#allocation2 + $0x3a0] sm:$0xff] %v1741
    %1998 = vst [vmem:[#allocation2 + $0x3a8] sm:$0xff] %v1742
    %1999 = vst [vmem:[#allocation2 + $0x3b0] sm:$0xff] %v1743
    %2000 = vst [vmem:[#allocation2 + $0x3b8] sm:$0xff] %v1744
    %2001 = vst [vmem:[#allocation2 + $0x3c0] sm:$0xff] %v1745
    %2002 = vst [vmem:[#allocation2 + $0x3c8] sm:$0xff] %v1746
    %2003 = vst [vmem:[#allocation2 + $0x3d0] sm:$0xff] %v1747
    %2004 = vst [vmem:[#allocation2 + $0x3d8] sm:$0xff] %v1748
    %2005 = vst [vmem:[#allocation2 + $0x3e0] sm:$0xff] %v1749
    %2006 = vst [vmem:[#allocation2 + $0x3e8] sm:$0xff] %v1750
    %2007 = vst [vmem:[#allocation2 + $0x3f0] sm:$0xff] %v1751
    %2008 = vst [vmem:[#allocation2 + $0x3f8] sm:$0xff] %v1752
    // Predicated region
    $region14: #{tpu_custom_call.1} parent=1 // pred_check
      _
    $region15: #{tpu_custom_call.1} parent=1 // pred_check_branch
      %2010 = sbr.rel (0) target = $region17
    $region16: #{tpu_custom_call.1} parent=1 // pred_region
      %s2012 = ssub.s32 16384, 16384
      %2013 = vsyncadd [#allocation3], %s2012
      %s2014 = sshll.u32 [#allocation2], 4
      %s2015 = int_to_ptr.vmem [resolvable:$true] %s2014
      %2020 = dma.vmem_to_hbm [thread:$0]  %s2015, 16384, %s3, [#allocation3], 256, 256, 16
    $region17: #{tpu_custom_call.1} parent=1 // pred_fallthru
      _
    // Predicated region
    $region18: #{tpu_custom_call.1} parent=1 // pred_check
      _
    $region19: #{tpu_custom_call.1} parent=1 // pred_check_branch
      %2022 = sbr.rel (0) target = $region21
    $region20: #{tpu_custom_call.1} parent=1 // pred_region
      %2023 = dma.done [#allocation3], 16384
    $region21: #{tpu_custom_call.1} parent=1 // pred_fallthru
      _
    %2024 = vsyncpa [#allocation3], 1

</llo_original>
